<compile_context>
chip_gen: v5e
topology: v5e:2x2
jax: 0.10.0
libtpu: 0.0.40
codegen_flags: <defaults>
</compile_context>

<pallas_src>
import functools
import math

import jax
import jax.numpy as jnp
from jax import lax
from jax.experimental import pallas as pl
from jax.experimental.pallas import tpu as pltpu

# ----------------------------- model config ---------------------------------
D_MODEL = 32
NUM_HEADS = 4
D_FF = 64
NUM_LAYERS = 2
SEQ = 8
BATCH = 2
LN_EPS = 1e-5
NEG_INF = -1e9


def _layer_norm(h, gamma, beta):
    mu = jnp.mean(h, axis=-1, keepdims=True)
    var = jnp.mean((h - mu) ** 2, axis=-1, keepdims=True)
    return (h - mu) * lax.rsqrt(var + LN_EPS) * gamma + beta


# ------------------------------- kernel --------------------------------------
def encoder_kernel(
    x_ref, keymask_ref, bb_ref, kmask_ref, vmask_ref, sumblk_ref,
    wqkv_ref, bqkv_ref, wo_ref, w1_ref, w2_ref, vec_ref, b1_ref,
    out_ref,
    *, num_layers, num_heads,
):
    """Whole batch (rows = B*S) and ALL layers in one grid step.

    x_ref:       (N, D)        flattened activations
    keymask_ref: (1, N)        1.0 = valid key, 0.0 = padded key (per call)
    bb_ref:      (N, N)        0 / -1e9 same-batch block bias   (init const)
    kmask_ref:   (D, H*N)      block-diagonal selector for the K-pack
    vmask_ref:   (H*N, D)      block-diagonal selector for the V-pack
    sumblk_ref:  (H*N, H*N)    block all-ones matrix (softmax denominators)
    wqkv_ref: (L, D, 3D)   bqkv_ref: (L, 1, 3D)    (scale folded into Q part)
    wo_ref:   (L, D, D)    w1_ref: (L, D, F)   w2_ref: (L, F, D)
    vec_ref:  (L, 6, D)    rows = [bo, b2, gamma1, beta1, gamma2, beta2]
    b1_ref:   (L, 1, F)
    """
    N, D = x_ref.shape
    H = num_heads

    # ---- per-call constants (hoisted out of the layer loop) ----
    key_bias = jnp.where(keymask_ref[...] > 0.0, 0.0, NEG_INF)   # (1, N)
    bias = bb_ref[...] + key_bias                                # (N, N)
    bias_t = jnp.concatenate([bias] * H, axis=1)                 # (N, H*N)
    kmask = kmask_ref[...]                                       # (D, H*N)
    vmask = vmask_ref[...]                                       # (H*N, D)
    sum_blk = sumblk_ref[...]                                    # (H*N, H*N)

    x = x_ref[...]                                               # (N, D)

    # Static unroll over layers: activations never leave VMEM/vregs.
    for l in range(num_layers):
        wqkv = wqkv_ref[l]            # (D, 3D)   (Q columns pre-scaled)
        bqkv = bqkv_ref[l]            # (1, 3D)
        wo = wo_ref[l]                # (D, D)
        w1 = w1_ref[l]                # (D, F)
        w2 = w2_ref[l]                # (F, D)
        b1 = b1_ref[l]                # (1, F)
        vecs = vec_ref[l]             # (6, D)
        bo, b2 = vecs[0:1, :], vecs[1:2, :]
        g1, be1 = vecs[2:3, :], vecs[3:4, :]
        g2, be2 = vecs[4:5, :], vecs[5:6, :]

        # ---- fused QKV projection: one MXU push ----
        qkv = jnp.dot(x, wqkv, preferred_element_type=jnp.float32) + bqkv
        q = qkv[:, 0:D]
        k = qkv[:, D:2 * D]
        v = qkv[:, 2 * D:3 * D]

        # ---- block-diagonal K / V packs: all heads in one matmul each ----
        kT = k.T                                                  # (D, N), once/layer
        kpack = jnp.concatenate([kT] * H, axis=1) * kmask         # (D, H*N)
        vpack = jnp.concatenate([v] * H, axis=0) * vmask          # (H*N, D)

        # scores for all heads: (N, H*N); scale already folded into wqkv
        s = jnp.dot(q, kpack, preferred_element_type=jnp.float32) + bias_t
        smax = jnp.max(s, axis=-1, keepdims=True)   # shared shift: exact per-head softmax
        p = jnp.exp(s - smax)
        # per-head denominators broadcast back over keys via one MXU push
        den = jnp.dot(p, sum_blk, preferred_element_type=jnp.float32)
        attn = p * pl.reciprocal(den, approx=True)
        # context: heads land already concatenated along D
        ctx = jnp.dot(attn, vpack, preferred_element_type=jnp.float32)   # (N, D)

        attn_out = jnp.dot(ctx, wo, preferred_element_type=jnp.float32) + bo

        # ---- residual + layernorm 1 ----
        # TODO(synk): dropout is identity (inference / eval mode).
        h1 = _layer_norm(x + attn_out, g1, be1)

        # ---- feed-forward ----
        ff = jnp.dot(h1, w1, preferred_element_type=jnp.float32) + b1
        ff = jnp.maximum(ff, 0.0)
        ff = jnp.dot(ff, w2, preferred_element_type=jnp.float32) + b2

        # ---- residual + layernorm 2 ----
        x = _layer_norm(h1 + ff, g2, be2)

    out_ref[...] = x


# ----------------------- init-time packing (NOT per call) --------------------
def pack_encoder_params(layer_params, num_heads):
    """One-time packing of per-layer params into stacked slabs.

    Folds the 1/sqrt(dk) attention scale into the Q weights and biases so the
    kernel never multiplies scores by a scalar.
    """
    d_model = layer_params[0]["wq"].shape[0]
    scale = 1.0 / math.sqrt(d_model // num_heads)
    wqkv = jnp.stack([jnp.concatenate([p["wq"] * scale, p["wk"], p["wv"]], axis=1)
                      for p in layer_params])                      # (L, D, 3D)
    bqkv = jnp.stack([jnp.concatenate([p["bq"] * scale, p["bk"], p["bv"]])[None, :]
                      for p in layer_params])                      # (L, 1, 3D)
    wo = jnp.stack([p["wo"] for p in layer_params])                # (L, D, D)
    w1 = jnp.stack([p["w1"] for p in layer_params])                # (L, D, F)
    w2 = jnp.stack([p["w2"] for p in layer_params])                # (L, F, D)
    b1 = jnp.stack([p["b1"][None, :] for p in layer_params])       # (L, 1, F)
    vecs = jnp.stack([jnp.stack([p["bo"], p["b2"], p["g1"], p["be1"],
                                 p["g2"], p["be2"]])
                      for p in layer_params])                      # (L, 6, D)
    return {"wqkv": wqkv, "bqkv": bqkv, "wo": wo, "w1": w1, "w2": w2,
            "b1": b1, "vecs": vecs}


def make_attn_consts(batch, seq, d_model, num_heads):
    """One-time constants: same-batch block bias and block-diagonal selectors."""
    N = batch * seq
    H = num_heads
    dk = d_model // H
    HN = H * N
    bid = jnp.arange(N, dtype=jnp.int32) // seq
    bb = jnp.where(bid[:, None] == bid[None, :], 0.0, NEG_INF).astype(jnp.float32)
    d_head = jnp.arange(d_model, dtype=jnp.int32) // dk            # head of feature d
    c_head = jnp.arange(HN, dtype=jnp.int32) // N                  # head of packed column
    kmask = (d_head[:, None] == c_head[None, :]).astype(jnp.float32)   # (D, HN)
    vmask = (c_head[:, None] == d_head[None, :]).astype(jnp.float32)   # (HN, D)
    sumblk = (c_head[:, None] == c_head[None, :]).astype(jnp.float32)  # (HN, HN)
    return {"bb": bb, "kmask": kmask, "vmask": vmask, "sumblk": sumblk}


# ------------------------------ forward call ---------------------------------
def _full_spec(shape):
    nd = len(shape)
    return pl.BlockSpec(shape, lambda i, _nd=nd: (0,) * _nd)


@functools.partial(jax.jit, static_argnames=("num_heads",))
def encoder_apply(packed, consts, x, mask, *, num_heads):
    """x: (B, S, D) f32, mask: (B, 1, S) f32 (1 = attend). Returns (B, S, D)."""
    B, S, D = x.shape
    N = B * S
    L, _, F = packed["w1"].shape
    HN = consts["sumblk"].shape[0]

    # Only per-call wrapper work: two reshapes (everything else is init-time).
    x_flat = x.reshape(N, D).astype(jnp.float32)
    keymask = mask[:, 0, :].reshape(1, N).astype(jnp.float32)

    kernel = functools.partial(encoder_kernel, num_layers=L, num_heads=num_heads)

    out = pl.pallas_call(
        kernel,
        out_shape=jax.ShapeDtypeStruct((N, D), jnp.float32),
        grid=(1,),
        in_specs=[
            _full_spec((N, D)),            # x
            _full_spec((1, N)),            # key padding mask (per call)
            _full_spec((N, N)),            # same-batch block bias (const)
            _full_spec((D, HN)),           # K-pack selector (const)
            _full_spec((HN, D)),           # V-pack selector (const)
            _full_spec((HN, HN)),          # block-ones denominator matrix (const)
            _full_spec((L, D, 3 * D)),     # wqkv (Q pre-scaled)
            _full_spec((L, 1, 3 * D)),     # bqkv
            _full_spec((L, D, D)),         # wo
            _full_spec((L, D, F)),         # w1
            _full_spec((L, F, D)),         # w2
            _full_spec((L, 6, D)),         # bo/b2/g1/be1/g2/be2
            _full_spec((L, 1, F)),         # b1
        ],
        out_specs=_full_spec((N, D)),
        compiler_params=pltpu.CompilerParams(
            dimension_semantics=("arbitrary",)),
    )(x_flat, keymask, consts["bb"], consts["kmask"], consts["vmask"],
      consts["sumblk"], packed["wqkv"], packed["bqkv"], packed["wo"],
      packed["w1"], packed["w2"], packed["vecs"], packed["b1"])
    return out.reshape(B, S, D)


# ----------------------------- pure-JAX reference ----------------------------
def encoder_reference(x, mask, layer_params, num_heads):
    B, S, D = x.shape
    H = num_heads
    dk = D // H
    scale = 1.0 / math.sqrt(dk)
    maskb = mask[:, None, :, :]                      # (B, 1, 1, S)
    for p in layer_params:
        q = x @ p["wq"] + p["bq"]
        k = x @ p["wk"] + p["bk"]
        v = x @ p["wv"] + p["bv"]
        qh = q.reshape(B, S, H, dk).transpose(0, 2, 1, 3)
        kh = k.reshape(B, S, H, dk).transpose(0, 2, 1, 3)
        vh = v.reshape(B, S, H, dk).transpose(0, 2, 1, 3)
        s = jnp.einsum("bhqd,bhkd->bhqk", qh, kh) * scale
        s = jnp.where(maskb > 0, s, NEG_INF)
        a = jax.nn.softmax(s, axis=-1)
        ctx = jnp.einsum("bhqk,bhkd->bhqd", a, vh)
        ctx = ctx.transpose(0, 2, 1, 3).reshape(B, S, D)
        attn_out = ctx @ p["wo"] + p["bo"]
        h1 = _layer_norm(x + attn_out, p["g1"], p["be1"])
        ff = jnp.maximum(h1 @ p["w1"] + p["b1"], 0.0) @ p["w2"] + p["b2"]
        x = _layer_norm(h1 + ff, p["g2"], p["be2"])
    return x


# ----------------------------------- init ------------------------------------
def init_layer_params(key, d_model, d_ff):
    ks = jax.random.split(key, 6)
    s = 0.05
    return {
        "wq": jax.random.normal(ks[0], (d_model, d_model), jnp.float32) * s,
        "bq": jnp.zeros((d_model,), jnp.float32),
        "wk": jax.random.normal(ks[1], (d_model, d_model), jnp.float32) * s,
        "bk": jnp.zeros((d_model,), jnp.float32),
        "wv": jax.random.normal(ks[2], (d_model, d_model), jnp.float32) * s,
        "bv": jnp.zeros((d_model,), jnp.float32),
        "wo": jax.random.normal(ks[3], (d_model, d_model), jnp.float32) * s,
        "bo": jnp.zeros((d_model,), jnp.float32),
        "w1": jax.random.normal(ks[4], (d_model, d_ff), jnp.float32) * s,
        "b1": jnp.zeros((d_ff,), jnp.float32),
        "w2": jax.random.normal(ks[5], (d_ff, d_model), jnp.float32) * s,
        "b2": jnp.zeros((d_model,), jnp.float32),
        "g1": jnp.ones((d_model,), jnp.float32),
        "be1": jnp.zeros((d_model,), jnp.float32),
        "g2": jnp.ones((d_model,), jnp.float32),
        "be2": jnp.zeros((d_model,), jnp.float32),
    }


if __name__ == "__main__":
    key = jax.random.PRNGKey(0)
    kx, *kl = jax.random.split(key, NUM_LAYERS + 1)

    x = jax.random.normal(kx, (BATCH, SEQ, D_MODEL), jnp.float32)
    # padding mask: batch 0 attends to all positions, batch 1 only to first 5
    valid_lens = jnp.array([SEQ, 5], dtype=jnp.int32)
    mask = (jnp.arange(SEQ)[None, :] < valid_lens[:, None]).astype(jnp.float32)
    mask = mask[:, None, :]                                  # (B, 1, S)

    layer_params = [init_layer_params(k, D_MODEL, D_FF) for k in kl]

    # One-time (init) packing — hoisted out of the per-call path.
    packed = pack_encoder_params(layer_params, NUM_HEADS)
    consts = make_attn_consts(BATCH, SEQ, D_MODEL, NUM_HEADS)

    out = encoder_apply(packed, consts, x, mask, num_heads=NUM_HEADS)
    out = jax.block_until_ready(out)
    assert out.shape == (BATCH, SEQ, D_MODEL)

    # loose tolerance: pl.reciprocal(approx=True) in the softmax denominator
    ref = encoder_reference(x, mask, layer_params, NUM_HEADS)
    err = float(jnp.max(jnp.abs(out - ref)))
    assert err < 1e-2, f"kernel vs reference max abs err = {err}"
    print("KERNEL_OK")
</pallas_src>

<mosaic_0001>
module attributes {stable_mosaic.version = 11 : i64} {
  func.func @encoder_kernel(%arg0: i32, %arg1: memref<16x32xf32, #tpu.memory_space<vmem>>, %arg2: memref<1x16xf32, #tpu.memory_space<vmem>>, %arg3: memref<16x16xf32, #tpu.memory_space<vmem>>, %arg4: memref<32x64xf32, #tpu.memory_space<vmem>>, %arg5: memref<64x32xf32, #tpu.memory_space<vmem>>, %arg6: memref<64x64xf32, #tpu.memory_space<vmem>>, %arg7: memref<2x32x96xf32, #tpu.memory_space<vmem>>, %arg8: memref<2x1x96xf32, #tpu.memory_space<vmem>>, %arg9: memref<2x32x32xf32, #tpu.memory_space<vmem>>, %arg10: memref<2x32x64xf32, #tpu.memory_space<vmem>>, %arg11: memref<2x64x32xf32, #tpu.memory_space<vmem>>, %arg12: memref<2x6x32xf32, #tpu.memory_space<vmem>>, %arg13: memref<2x1x64xf32, #tpu.memory_space<vmem>>, %arg14: memref<16x32xf32, #tpu.memory_space<vmem>>) attributes {dimension_semantics = [#tpu.dimension_semantics<arbitrary>], iteration_bounds = array<i64: 1>, scalar_prefetch = 0 : i64, scratch_operands = 0 : i64, tpu.core_type = #tpu.core_type<tc>, window_params = [{pipeline_mode = #tpu.pipeline_mode<synchronous>, transform_indices = @transform_0, window_bounds = array<i64: 16, 32>}, {pipeline_mode = #tpu.pipeline_mode<synchronous>, transform_indices = @transform_1, window_bounds = array<i64: 1, 16>}, {pipeline_mode = #tpu.pipeline_mode<synchronous>, transform_indices = @transform_2, window_bounds = array<i64: 16, 16>}, {pipeline_mode = #tpu.pipeline_mode<synchronous>, transform_indices = @transform_3, window_bounds = array<i64: 32, 64>}, {pipeline_mode = #tpu.pipeline_mode<synchronous>, transform_indices = @transform_4, window_bounds = array<i64: 64, 32>}, {pipeline_mode = #tpu.pipeline_mode<synchronous>, transform_indices = @transform_5, window_bounds = array<i64: 64, 64>}, {pipeline_mode = #tpu.pipeline_mode<synchronous>, transform_indices = @transform_6, window_bounds = array<i64: 2, 32, 96>}, {pipeline_mode = #tpu.pipeline_mode<synchronous>, transform_indices = @transform_7, window_bounds = array<i64: 2, 1, 96>}, {pipeline_mode = #tpu.pipeline_mode<synchronous>, transform_indices = @transform_8, window_bounds = array<i64: 2, 32, 32>}, {pipeline_mode = #tpu.pipeline_mode<synchronous>, transform_indices = @transform_9, window_bounds = array<i64: 2, 32, 64>}, {pipeline_mode = #tpu.pipeline_mode<synchronous>, transform_indices = @transform_10, window_bounds = array<i64: 2, 64, 32>}, {pipeline_mode = #tpu.pipeline_mode<synchronous>, transform_indices = @transform_11, window_bounds = array<i64: 2, 6, 32>}, {pipeline_mode = #tpu.pipeline_mode<synchronous>, transform_indices = @transform_12, window_bounds = array<i64: 2, 1, 64>}, {pipeline_mode = #tpu.pipeline_mode<synchronous>, transform_indices = @transform_13, window_bounds = array<i64: 16, 32>}]} {
    %c0 = arith.constant 0 : index
    %c0_0 = arith.constant 0 : index
    %0 = vector.load %arg2[%c0, %c0_0] : memref<1x16xf32, #tpu.memory_space<vmem>>, vector<1x16xf32>
    %cst = arith.constant 0.000000e+00 : f32
    %1 = vector.broadcast %cst : f32 to vector<1x16xf32>
    %2 = arith.cmpf ogt, %0, %1 : vector<1x16xf32>
    %cst_1 = arith.constant 0.000000e+00 : f32
    %cst_2 = arith.constant -1.000000e+09 : f32
    %3 = vector.broadcast %cst_1 : f32 to vector<1x16xf32>
    %4 = vector.broadcast %cst_2 : f32 to vector<1x16xf32>
    %5 = arith.select %2, %3, %4 : vector<1x16xi1>, vector<1x16xf32>
    %c0_3 = arith.constant 0 : index
    %c0_4 = arith.constant 0 : index
    %6 = vector.load %arg3[%c0_3, %c0_4] : memref<16x16xf32, #tpu.memory_space<vmem>>, vector<16x16xf32>
    %7 = vector.broadcast %5 : vector<1x16xf32> to vector<16x16xf32>
    %8 = arith.addf %6, %7 : vector<16x16xf32>
    %9 = tpu.concatenate %8, %8, %8, %8 in 1 : vector<16x16xf32>, vector<16x16xf32>, vector<16x16xf32>, vector<16x16xf32> -> vector<16x64xf32>
    %c0_5 = arith.constant 0 : index
    %c0_6 = arith.constant 0 : index
    %10 = vector.load %arg4[%c0_5, %c0_6] : memref<32x64xf32, #tpu.memory_space<vmem>>, vector<32x64xf32>
    %c0_7 = arith.constant 0 : index
    %c0_8 = arith.constant 0 : index
    %11 = vector.load %arg5[%c0_7, %c0_8] : memref<64x32xf32, #tpu.memory_space<vmem>>, vector<64x32xf32>
    %c0_9 = arith.constant 0 : index
    %c0_10 = arith.constant 0 : index
    %12 = vector.load %arg6[%c0_9, %c0_10] : memref<64x64xf32, #tpu.memory_space<vmem>>, vector<64x64xf32>
    %c0_11 = arith.constant 0 : index
    %c0_12 = arith.constant 0 : index
    %13 = vector.load %arg1[%c0_11, %c0_12] : memref<16x32xf32, #tpu.memory_space<vmem>>, vector<16x32xf32>
    %c0_13 = arith.constant 0 : index
    %c0_14 = arith.constant 0 : index
    %c0_15 = arith.constant 0 : index
    %14 = vector.load %arg7[%c0_13, %c0_14, %c0_15] : memref<2x32x96xf32, #tpu.memory_space<vmem>>, vector<1x32x96xf32>
    %15 = vector.shape_cast %14 : vector<1x32x96xf32> to vector<32x96xf32>
    %c0_16 = arith.constant 0 : index
    %c0_17 = arith.constant 0 : index
    %c0_18 = arith.constant 0 : index
    %16 = vector.load %arg8[%c0_16, %c0_17, %c0_18] : memref<2x1x96xf32, #tpu.memory_space<vmem>>, vector<1x1x96xf32>
    %17 = vector.shape_cast %16 : vector<1x1x96xf32> to vector<1x96xf32>
    %c0_19 = arith.constant 0 : index
    %c0_20 = arith.constant 0 : index
    %c0_21 = arith.constant 0 : index
    %18 = vector.load %arg9[%c0_19, %c0_20, %c0_21] : memref<2x32x32xf32, #tpu.memory_space<vmem>>, vector<1x32x32xf32>
    %19 = vector.shape_cast %18 : vector<1x32x32xf32> to vector<32x32xf32>
    %c0_22 = arith.constant 0 : index
    %c0_23 = arith.constant 0 : index
    %c0_24 = arith.constant 0 : index
    %20 = vector.load %arg10[%c0_22, %c0_23, %c0_24] : memref<2x32x64xf32, #tpu.memory_space<vmem>>, vector<1x32x64xf32>
    %21 = vector.shape_cast %20 : vector<1x32x64xf32> to vector<32x64xf32>
    %c0_25 = arith.constant 0 : index
    %c0_26 = arith.constant 0 : index
    %c0_27 = arith.constant 0 : index
    %22 = vector.load %arg11[%c0_25, %c0_26, %c0_27] : memref<2x64x32xf32, #tpu.memory_space<vmem>>, vector<1x64x32xf32>
    %23 = vector.shape_cast %22 : vector<1x64x32xf32> to vector<64x32xf32>
    %c0_28 = arith.constant 0 : index
    %c0_29 = arith.constant 0 : index
    %c0_30 = arith.constant 0 : index
    %24 = vector.load %arg13[%c0_28, %c0_29, %c0_30] : memref<2x1x64xf32, #tpu.memory_space<vmem>>, vector<1x1x64xf32>
    %25 = vector.shape_cast %24 : vector<1x1x64xf32> to vector<1x64xf32>
    %c0_31 = arith.constant 0 : index
    %c0_32 = arith.constant 0 : index
    %c0_33 = arith.constant 0 : index
    %26 = vector.load %arg12[%c0_31, %c0_32, %c0_33] : memref<2x6x32xf32, #tpu.memory_space<vmem>>, vector<1x6x32xf32>
    %27 = vector.shape_cast %26 : vector<1x6x32xf32> to vector<6x32xf32>
    %28 = vector.extract_strided_slice %27 {offsets = [0, 0], sizes = [1, 32], strides = [1, 1]} : vector<6x32xf32> to vector<1x32xf32>
    %29 = vector.extract_strided_slice %27 {offsets = [1, 0], sizes = [1, 32], strides = [1, 1]} : vector<6x32xf32> to vector<1x32xf32>
    %30 = vector.extract_strided_slice %27 {offsets = [2, 0], sizes = [1, 32], strides = [1, 1]} : vector<6x32xf32> to vector<1x32xf32>
    %31 = vector.extract_strided_slice %27 {offsets = [3, 0], sizes = [1, 32], strides = [1, 1]} : vector<6x32xf32> to vector<1x32xf32>
    %32 = vector.extract_strided_slice %27 {offsets = [4, 0], sizes = [1, 32], strides = [1, 1]} : vector<6x32xf32> to vector<1x32xf32>
    %33 = vector.extract_strided_slice %27 {offsets = [5, 0], sizes = [1, 32], strides = [1, 1]} : vector<6x32xf32> to vector<1x32xf32>
    %cst_34 = arith.constant dense<0.000000e+00> : vector<16x96xf32>
    %34 = tpu.matmul %13, %15, %cst_34 {dimension_numbers = #tpu.dot_dimension_numbers<[1], [0], [0], [1], [0, 0, 1, 1], [], []>} : vector<16x32xf32>, vector<32x96xf32>, vector<16x96xf32> -> vector<16x96xf32>
    %35 = vector.broadcast %17 : vector<1x96xf32> to vector<16x96xf32>
    %36 = arith.addf %34, %35 : vector<16x96xf32>
    %37 = vector.extract_strided_slice %36 {offsets = [0, 0], sizes = [16, 32], strides = [1, 1]} : vector<16x96xf32> to vector<16x32xf32>
    %38 = vector.extract_strided_slice %36 {offsets = [0, 32], sizes = [16, 32], strides = [1, 1]} : vector<16x96xf32> to vector<16x32xf32>
    %39 = vector.extract_strided_slice %36 {offsets = [0, 64], sizes = [16, 32], strides = [1, 1]} : vector<16x96xf32> to vector<16x32xf32>
    %40 = tpu.transpose %38, [1, 0] : vector<16x32xf32> -> vector<32x16xf32>
    %41 = tpu.concatenate %40, %40, %40, %40 in 1 : vector<32x16xf32>, vector<32x16xf32>, vector<32x16xf32>, vector<32x16xf32> -> vector<32x64xf32>
    %42 = arith.mulf %41, %10 : vector<32x64xf32>
    %43 = tpu.concatenate %39, %39, %39, %39 in 0 : vector<16x32xf32>, vector<16x32xf32>, vector<16x32xf32>, vector<16x32xf32> -> vector<64x32xf32>
    %44 = arith.mulf %43, %11 : vector<64x32xf32>
    %cst_35 = arith.constant dense<0.000000e+00> : vector<16x64xf32>
    %45 = tpu.matmul %37, %42, %cst_35 {dimension_numbers = #tpu.dot_dimension_numbers<[1], [0], [0], [1], [0, 0, 1, 1], [], []>} : vector<16x32xf32>, vector<32x64xf32>, vector<16x64xf32> -> vector<16x64xf32>
    %46 = arith.addf %45, %9 : vector<16x64xf32>
    %cst_36 = arith.constant dense<0xFF800000> : vector<16xf32>
    %47 = vector.multi_reduction <maximumf>, %46, %cst_36 [1] : vector<16x64xf32> to vector<16xf32>
    %48 = vector.shape_cast %47 : vector<16xf32> to vector<16x1xf32>
    %49 = vector.broadcast %48 : vector<16x1xf32> to vector<16x64xf32>
    %50 = arith.subf %46, %49 : vector<16x64xf32>
    %51 = math.exp %50 : vector<16x64xf32>
    %cst_37 = arith.constant dense<0.000000e+00> : vector<16x64xf32>
    %52 = tpu.matmul %51, %12, %cst_37 {dimension_numbers = #tpu.dot_dimension_numbers<[1], [0], [0], [1], [0, 0, 1, 1], [], []>} : vector<16x64xf32>, vector<64x64xf32>, vector<16x64xf32> -> vector<16x64xf32>
    %53 = tpu.reciprocal %52 {approx = true} : vector<16x64xf32> -> vector<16x64xf32>
    %54 = arith.mulf %51, %53 : vector<16x64xf32>
    %cst_38 = arith.constant dense<0.000000e+00> : vector<16x32xf32>
    %55 = tpu.matmul %54, %44, %cst_38 {dimension_numbers = #tpu.dot_dimension_numbers<[1], [0], [0], [1], [0, 0, 1, 1], [], []>} : vector<16x64xf32>, vector<64x32xf32>, vector<16x32xf32> -> vector<16x32xf32>
    %cst_39 = arith.constant dense<0.000000e+00> : vector<16x32xf32>
    %56 = tpu.matmul %55, %19, %cst_39 {dimension_numbers = #tpu.dot_dimension_numbers<[1], [0], [0], [1], [0, 0, 1, 1], [], []>} : vector<16x32xf32>, vector<32x32xf32>, vector<16x32xf32> -> vector<16x32xf32>
    %57 = vector.broadcast %28 : vector<1x32xf32> to vector<16x32xf32>
    %58 = arith.addf %56, %57 : vector<16x32xf32>
    %59 = arith.addf %13, %58 : vector<16x32xf32>
    %cst_40 = arith.constant dense<0.000000e+00> : vector<16xf32>
    %60 = vector.multi_reduction <add>, %59, %cst_40 [1] : vector<16x32xf32> to vector<16xf32>
    %61 = vector.shape_cast %60 : vector<16xf32> to vector<16x1xf32>
    %cst_41 = arith.constant 3.200000e+01 : f32
    %62 = vector.broadcast %cst_41 : f32 to vector<16x1xf32>
    %63 = arith.divf %61, %62 : vector<16x1xf32>
    %64 = vector.broadcast %63 : vector<16x1xf32> to vector<16x32xf32>
    %65 = arith.subf %59, %64 : vector<16x32xf32>
    %66 = arith.mulf %65, %65 : vector<16x32xf32>
    %cst_42 = arith.constant dense<0.000000e+00> : vector<16xf32>
    %67 = vector.multi_reduction <add>, %66, %cst_42 [1] : vector<16x32xf32> to vector<16xf32>
    %68 = vector.shape_cast %67 : vector<16xf32> to vector<16x1xf32>
    %cst_43 = arith.constant 3.200000e+01 : f32
    %69 = vector.broadcast %cst_43 : f32 to vector<16x1xf32>
    %70 = arith.divf %68, %69 : vector<16x1xf32>
    %71 = vector.broadcast %63 : vector<16x1xf32> to vector<16x32xf32>
    %72 = arith.subf %59, %71 : vector<16x32xf32>
    %cst_44 = arith.constant 9.99999974E-6 : f32
    %73 = vector.broadcast %cst_44 : f32 to vector<16x1xf32>
    %74 = arith.addf %70, %73 : vector<16x1xf32>
    %75 = math.rsqrt %74 : vector<16x1xf32>
    %76 = vector.broadcast %75 : vector<16x1xf32> to vector<16x32xf32>
    %77 = arith.mulf %72, %76 : vector<16x32xf32>
    %78 = vector.broadcast %30 : vector<1x32xf32> to vector<16x32xf32>
    %79 = arith.mulf %77, %78 : vector<16x32xf32>
    %80 = vector.broadcast %31 : vector<1x32xf32> to vector<16x32xf32>
    %81 = arith.addf %79, %80 : vector<16x32xf32>
    %cst_45 = arith.constant dense<0.000000e+00> : vector<16x64xf32>
    %82 = tpu.matmul %81, %21, %cst_45 {dimension_numbers = #tpu.dot_dimension_numbers<[1], [0], [0], [1], [0, 0, 1, 1], [], []>} : vector<16x32xf32>, vector<32x64xf32>, vector<16x64xf32> -> vector<16x64xf32>
    %83 = vector.broadcast %25 : vector<1x64xf32> to vector<16x64xf32>
    %84 = arith.addf %82, %83 : vector<16x64xf32>
    %cst_46 = arith.constant 0.000000e+00 : f32
    %85 = vector.broadcast %cst_46 : f32 to vector<16x64xf32>
    %86 = arith.maximumf %84, %85 : vector<16x64xf32>
    %cst_47 = arith.constant dense<0.000000e+00> : vector<16x32xf32>
    %87 = tpu.matmul %86, %23, %cst_47 {dimension_numbers = #tpu.dot_dimension_numbers<[1], [0], [0], [1], [0, 0, 1, 1], [], []>} : vector<16x64xf32>, vector<64x32xf32>, vector<16x32xf32> -> vector<16x32xf32>
    %88 = vector.broadcast %29 : vector<1x32xf32> to vector<16x32xf32>
    %89 = arith.addf %87, %88 : vector<16x32xf32>
    %90 = arith.addf %81, %89 : vector<16x32xf32>
    %cst_48 = arith.constant dense<0.000000e+00> : vector<16xf32>
    %91 = vector.multi_reduction <add>, %90, %cst_48 [1] : vector<16x32xf32> to vector<16xf32>
    %92 = vector.shape_cast %91 : vector<16xf32> to vector<16x1xf32>
    %cst_49 = arith.constant 3.200000e+01 : f32
    %93 = vector.broadcast %cst_49 : f32 to vector<16x1xf32>
    %94 = arith.divf %92, %93 : vector<16x1xf32>
    %95 = vector.broadcast %94 : vector<16x1xf32> to vector<16x32xf32>
    %96 = arith.subf %90, %95 : vector<16x32xf32>
    %97 = arith.mulf %96, %96 : vector<16x32xf32>
    %cst_50 = arith.constant dense<0.000000e+00> : vector<16xf32>
    %98 = vector.multi_reduction <add>, %97, %cst_50 [1] : vector<16x32xf32> to vector<16xf32>
    %99 = vector.shape_cast %98 : vector<16xf32> to vector<16x1xf32>
    %cst_51 = arith.constant 3.200000e+01 : f32
    %100 = vector.broadcast %cst_51 : f32 to vector<16x1xf32>
    %101 = arith.divf %99, %100 : vector<16x1xf32>
    %102 = vector.broadcast %94 : vector<16x1xf32> to vector<16x32xf32>
    %103 = arith.subf %90, %102 : vector<16x32xf32>
    %cst_52 = arith.constant 9.99999974E-6 : f32
    %104 = vector.broadcast %cst_52 : f32 to vector<16x1xf32>
    %105 = arith.addf %101, %104 : vector<16x1xf32>
    %106 = math.rsqrt %105 : vector<16x1xf32>
    %107 = vector.broadcast %106 : vector<16x1xf32> to vector<16x32xf32>
    %108 = arith.mulf %103, %107 : vector<16x32xf32>
    %109 = vector.broadcast %32 : vector<1x32xf32> to vector<16x32xf32>
    %110 = arith.mulf %108, %109 : vector<16x32xf32>
    %111 = vector.broadcast %33 : vector<1x32xf32> to vector<16x32xf32>
    %112 = arith.addf %110, %111 : vector<16x32xf32>
    %c1 = arith.constant 1 : index
    %c0_53 = arith.constant 0 : index
    %c0_54 = arith.constant 0 : index
    %113 = vector.load %arg7[%c1, %c0_53, %c0_54] : memref<2x32x96xf32, #tpu.memory_space<vmem>>, vector<1x32x96xf32>
    %114 = vector.shape_cast %113 : vector<1x32x96xf32> to vector<32x96xf32>
    %c1_55 = arith.constant 1 : index
    %c0_56 = arith.constant 0 : index
    %c0_57 = arith.constant 0 : index
    %115 = vector.load %arg8[%c1_55, %c0_56, %c0_57] : memref<2x1x96xf32, #tpu.memory_space<vmem>>, vector<1x1x96xf32>
    %116 = vector.shape_cast %115 : vector<1x1x96xf32> to vector<1x96xf32>
    %c1_58 = arith.constant 1 : index
    %c0_59 = arith.constant 0 : index
    %c0_60 = arith.constant 0 : index
    %117 = vector.load %arg9[%c1_58, %c0_59, %c0_60] : memref<2x32x32xf32, #tpu.memory_space<vmem>>, vector<1x32x32xf32>
    %118 = vector.shape_cast %117 : vector<1x32x32xf32> to vector<32x32xf32>
    %c1_61 = arith.constant 1 : index
    %c0_62 = arith.constant 0 : index
    %c0_63 = arith.constant 0 : index
    %119 = vector.load %arg10[%c1_61, %c0_62, %c0_63] : memref<2x32x64xf32, #tpu.memory_space<vmem>>, vector<1x32x64xf32>
    %120 = vector.shape_cast %119 : vector<1x32x64xf32> to vector<32x64xf32>
    %c1_64 = arith.constant 1 : index
    %c0_65 = arith.constant 0 : index
    %c0_66 = arith.constant 0 : index
    %121 = vector.load %arg11[%c1_64, %c0_65, %c0_66] : memref<2x64x32xf32, #tpu.memory_space<vmem>>, vector<1x64x32xf32>
    %122 = vector.shape_cast %121 : vector<1x64x32xf32> to vector<64x32xf32>
    %c1_67 = arith.constant 1 : index
    %c0_68 = arith.constant 0 : index
    %c0_69 = arith.constant 0 : index
    %123 = vector.load %arg13[%c1_67, %c0_68, %c0_69] : memref<2x1x64xf32, #tpu.memory_space<vmem>>, vector<1x1x64xf32>
    %124 = vector.shape_cast %123 : vector<1x1x64xf32> to vector<1x64xf32>
    %c1_70 = arith.constant 1 : index
    %c0_71 = arith.constant 0 : index
    %c0_72 = arith.constant 0 : index
    %125 = vector.load %arg12[%c1_70, %c0_71, %c0_72] : memref<2x6x32xf32, #tpu.memory_space<vmem>>, vector<1x6x32xf32>
    %126 = vector.shape_cast %125 : vector<1x6x32xf32> to vector<6x32xf32>
    %127 = vector.extract_strided_slice %126 {offsets = [0, 0], sizes = [1, 32], strides = [1, 1]} : vector<6x32xf32> to vector<1x32xf32>
    %128 = vector.extract_strided_slice %126 {offsets = [1, 0], sizes = [1, 32], strides = [1, 1]} : vector<6x32xf32> to vector<1x32xf32>
    %129 = vector.extract_strided_slice %126 {offsets = [2, 0], sizes = [1, 32], strides = [1, 1]} : vector<6x32xf32> to vector<1x32xf32>
    %130 = vector.extract_strided_slice %126 {offsets = [3, 0], sizes = [1, 32], strides = [1, 1]} : vector<6x32xf32> to vector<1x32xf32>
    %131 = vector.extract_strided_slice %126 {offsets = [4, 0], sizes = [1, 32], strides = [1, 1]} : vector<6x32xf32> to vector<1x32xf32>
    %132 = vector.extract_strided_slice %126 {offsets = [5, 0], sizes = [1, 32], strides = [1, 1]} : vector<6x32xf32> to vector<1x32xf32>
    %cst_73 = arith.constant dense<0.000000e+00> : vector<16x96xf32>
    %133 = tpu.matmul %112, %114, %cst_73 {dimension_numbers = #tpu.dot_dimension_numbers<[1], [0], [0], [1], [0, 0, 1, 1], [], []>} : vector<16x32xf32>, vector<32x96xf32>, vector<16x96xf32> -> vector<16x96xf32>
    %134 = vector.broadcast %116 : vector<1x96xf32> to vector<16x96xf32>
    %135 = arith.addf %133, %134 : vector<16x96xf32>
    %136 = vector.extract_strided_slice %135 {offsets = [0, 0], sizes = [16, 32], strides = [1, 1]} : vector<16x96xf32> to vector<16x32xf32>
    %137 = vector.extract_strided_slice %135 {offsets = [0, 32], sizes = [16, 32], strides = [1, 1]} : vector<16x96xf32> to vector<16x32xf32>
    %138 = vector.extract_strided_slice %135 {offsets = [0, 64], sizes = [16, 32], strides = [1, 1]} : vector<16x96xf32> to vector<16x32xf32>
    %139 = tpu.transpose %137, [1, 0] : vector<16x32xf32> -> vector<32x16xf32>
    %140 = tpu.concatenate %139, %139, %139, %139 in 1 : vector<32x16xf32>, vector<32x16xf32>, vector<32x16xf32>, vector<32x16xf32> -> vector<32x64xf32>
    %141 = arith.mulf %140, %10 : vector<32x64xf32>
    %142 = tpu.concatenate %138, %138, %138, %138 in 0 : vector<16x32xf32>, vector<16x32xf32>, vector<16x32xf32>, vector<16x32xf32> -> vector<64x32xf32>
    %143 = arith.mulf %142, %11 : vector<64x32xf32>
    %cst_74 = arith.constant dense<0.000000e+00> : vector<16x64xf32>
    %144 = tpu.matmul %136, %141, %cst_74 {dimension_numbers = #tpu.dot_dimension_numbers<[1], [0], [0], [1], [0, 0, 1, 1], [], []>} : vector<16x32xf32>, vector<32x64xf32>, vector<16x64xf32> -> vector<16x64xf32>
    %145 = arith.addf %144, %9 : vector<16x64xf32>
    %cst_75 = arith.constant dense<0xFF800000> : vector<16xf32>
    %146 = vector.multi_reduction <maximumf>, %145, %cst_75 [1] : vector<16x64xf32> to vector<16xf32>
    %147 = vector.shape_cast %146 : vector<16xf32> to vector<16x1xf32>
    %148 = vector.broadcast %147 : vector<16x1xf32> to vector<16x64xf32>
    %149 = arith.subf %145, %148 : vector<16x64xf32>
    %150 = math.exp %149 : vector<16x64xf32>
    %cst_76 = arith.constant dense<0.000000e+00> : vector<16x64xf32>
    %151 = tpu.matmul %150, %12, %cst_76 {dimension_numbers = #tpu.dot_dimension_numbers<[1], [0], [0], [1], [0, 0, 1, 1], [], []>} : vector<16x64xf32>, vector<64x64xf32>, vector<16x64xf32> -> vector<16x64xf32>
    %152 = tpu.reciprocal %151 {approx = true} : vector<16x64xf32> -> vector<16x64xf32>
    %153 = arith.mulf %150, %152 : vector<16x64xf32>
    %cst_77 = arith.constant dense<0.000000e+00> : vector<16x32xf32>
    %154 = tpu.matmul %153, %143, %cst_77 {dimension_numbers = #tpu.dot_dimension_numbers<[1], [0], [0], [1], [0, 0, 1, 1], [], []>} : vector<16x64xf32>, vector<64x32xf32>, vector<16x32xf32> -> vector<16x32xf32>
    %cst_78 = arith.constant dense<0.000000e+00> : vector<16x32xf32>
    %155 = tpu.matmul %154, %118, %cst_78 {dimension_numbers = #tpu.dot_dimension_numbers<[1], [0], [0], [1], [0, 0, 1, 1], [], []>} : vector<16x32xf32>, vector<32x32xf32>, vector<16x32xf32> -> vector<16x32xf32>
    %156 = vector.broadcast %127 : vector<1x32xf32> to vector<16x32xf32>
    %157 = arith.addf %155, %156 : vector<16x32xf32>
    %158 = arith.addf %112, %157 : vector<16x32xf32>
    %cst_79 = arith.constant dense<0.000000e+00> : vector<16xf32>
    %159 = vector.multi_reduction <add>, %158, %cst_79 [1] : vector<16x32xf32> to vector<16xf32>
    %160 = vector.shape_cast %159 : vector<16xf32> to vector<16x1xf32>
    %cst_80 = arith.constant 3.200000e+01 : f32
    %161 = vector.broadcast %cst_80 : f32 to vector<16x1xf32>
    %162 = arith.divf %160, %161 : vector<16x1xf32>
    %163 = vector.broadcast %162 : vector<16x1xf32> to vector<16x32xf32>
    %164 = arith.subf %158, %163 : vector<16x32xf32>
    %165 = arith.mulf %164, %164 : vector<16x32xf32>
    %cst_81 = arith.constant dense<0.000000e+00> : vector<16xf32>
    %166 = vector.multi_reduction <add>, %165, %cst_81 [1] : vector<16x32xf32> to vector<16xf32>
    %167 = vector.shape_cast %166 : vector<16xf32> to vector<16x1xf32>
    %cst_82 = arith.constant 3.200000e+01 : f32
    %168 = vector.broadcast %cst_82 : f32 to vector<16x1xf32>
    %169 = arith.divf %167, %168 : vector<16x1xf32>
    %170 = vector.broadcast %162 : vector<16x1xf32> to vector<16x32xf32>
    %171 = arith.subf %158, %170 : vector<16x32xf32>
    %cst_83 = arith.constant 9.99999974E-6 : f32
    %172 = vector.broadcast %cst_83 : f32 to vector<16x1xf32>
    %173 = arith.addf %169, %172 : vector<16x1xf32>
    %174 = math.rsqrt %173 : vector<16x1xf32>
    %175 = vector.broadcast %174 : vector<16x1xf32> to vector<16x32xf32>
    %176 = arith.mulf %171, %175 : vector<16x32xf32>
    %177 = vector.broadcast %129 : vector<1x32xf32> to vector<16x32xf32>
    %178 = arith.mulf %176, %177 : vector<16x32xf32>
    %179 = vector.broadcast %130 : vector<1x32xf32> to vector<16x32xf32>
    %180 = arith.addf %178, %179 : vector<16x32xf32>
    %cst_84 = arith.constant dense<0.000000e+00> : vector<16x64xf32>
    %181 = tpu.matmul %180, %120, %cst_84 {dimension_numbers = #tpu.dot_dimension_numbers<[1], [0], [0], [1], [0, 0, 1, 1], [], []>} : vector<16x32xf32>, vector<32x64xf32>, vector<16x64xf32> -> vector<16x64xf32>
    %182 = vector.broadcast %124 : vector<1x64xf32> to vector<16x64xf32>
    %183 = arith.addf %181, %182 : vector<16x64xf32>
    %cst_85 = arith.constant 0.000000e+00 : f32
    %184 = vector.broadcast %cst_85 : f32 to vector<16x64xf32>
    %185 = arith.maximumf %183, %184 : vector<16x64xf32>
    %cst_86 = arith.constant dense<0.000000e+00> : vector<16x32xf32>
    %186 = tpu.matmul %185, %122, %cst_86 {dimension_numbers = #tpu.dot_dimension_numbers<[1], [0], [0], [1], [0, 0, 1, 1], [], []>} : vector<16x64xf32>, vector<64x32xf32>, vector<16x32xf32> -> vector<16x32xf32>
    %187 = vector.broadcast %128 : vector<1x32xf32> to vector<16x32xf32>
    %188 = arith.addf %186, %187 : vector<16x32xf32>
    %189 = arith.addf %180, %188 : vector<16x32xf32>
    %cst_87 = arith.constant dense<0.000000e+00> : vector<16xf32>
    %190 = vector.multi_reduction <add>, %189, %cst_87 [1] : vector<16x32xf32> to vector<16xf32>
    %191 = vector.shape_cast %190 : vector<16xf32> to vector<16x1xf32>
    %cst_88 = arith.constant 3.200000e+01 : f32
    %192 = vector.broadcast %cst_88 : f32 to vector<16x1xf32>
    %193 = arith.divf %191, %192 : vector<16x1xf32>
    %194 = vector.broadcast %193 : vector<16x1xf32> to vector<16x32xf32>
    %195 = arith.subf %189, %194 : vector<16x32xf32>
    %196 = arith.mulf %195, %195 : vector<16x32xf32>
    %cst_89 = arith.constant dense<0.000000e+00> : vector<16xf32>
    %197 = vector.multi_reduction <add>, %196, %cst_89 [1] : vector<16x32xf32> to vector<16xf32>
    %198 = vector.shape_cast %197 : vector<16xf32> to vector<16x1xf32>
    %cst_90 = arith.constant 3.200000e+01 : f32
    %199 = vector.broadcast %cst_90 : f32 to vector<16x1xf32>
    %200 = arith.divf %198, %199 : vector<16x1xf32>
    %201 = vector.broadcast %193 : vector<16x1xf32> to vector<16x32xf32>
    %202 = arith.subf %189, %201 : vector<16x32xf32>
    %cst_91 = arith.constant 9.99999974E-6 : f32
    %203 = vector.broadcast %cst_91 : f32 to vector<16x1xf32>
    %204 = arith.addf %200, %203 : vector<16x1xf32>
    %205 = math.rsqrt %204 : vector<16x1xf32>
    %206 = vector.broadcast %205 : vector<16x1xf32> to vector<16x32xf32>
    %207 = arith.mulf %202, %206 : vector<16x32xf32>
    %208 = vector.broadcast %131 : vector<1x32xf32> to vector<16x32xf32>
    %209 = arith.mulf %207, %208 : vector<16x32xf32>
    %210 = vector.broadcast %132 : vector<1x32xf32> to vector<16x32xf32>
    %211 = arith.addf %209, %210 : vector<16x32xf32>
    %c0_92 = arith.constant 0 : index
    %c0_93 = arith.constant 0 : index
    %212 = vector.load %arg14[%c0_92, %c0_93] : memref<16x32xf32, #tpu.memory_space<vmem>>, vector<16x32xf32>
    tpu.vector_store %arg14[%c0_92, %c0_93], %211 {strides = array<i32>} : memref<16x32xf32, #tpu.memory_space<vmem>>, vector<16x32xf32>,
    return
  }
  func.func @transform_0(%arg0: i32) -> (i32, i32) {
    %c0_i32 = arith.constant 0 : i32
    %c0_i32_0 = arith.constant 0 : i32
    %c0_i32_1 = arith.constant 0 : i32
    return %c0_i32, %c0_i32_0 : i32, i32
  }
  func.func @transform_1(%arg0: i32) -> (i32, i32) {
    %c0_i32 = arith.constant 0 : i32
    %c0_i32_0 = arith.constant 0 : i32
    %c0_i32_1 = arith.constant 0 : i32
    return %c0_i32, %c0_i32_0 : i32, i32
  }
  func.func @transform_2(%arg0: i32) -> (i32, i32) {
    %c0_i32 = arith.constant 0 : i32
    %c0_i32_0 = arith.constant 0 : i32
    %c0_i32_1 = arith.constant 0 : i32
    return %c0_i32, %c0_i32_0 : i32, i32
  }
  func.func @transform_3(%arg0: i32) -> (i32, i32) {
    %c0_i32 = arith.constant 0 : i32
    %c0_i32_0 = arith.constant 0 : i32
    %c0_i32_1 = arith.constant 0 : i32
    return %c0_i32, %c0_i32_0 : i32, i32
  }
  func.func @transform_4(%arg0: i32) -> (i32, i32) {
    %c0_i32 = arith.constant 0 : i32
    %c0_i32_0 = arith.constant 0 : i32
    %c0_i32_1 = arith.constant 0 : i32
    return %c0_i32, %c0_i32_0 : i32, i32
  }
  func.func @transform_5(%arg0: i32) -> (i32, i32) {
    %c0_i32 = arith.constant 0 : i32
    %c0_i32_0 = arith.constant 0 : i32
    %c0_i32_1 = arith.constant 0 : i32
    return %c0_i32, %c0_i32_0 : i32, i32
  }
  func.func @transform_6(%arg0: i32) -> (i32, i32, i32) {
    %c0_i32 = arith.constant 0 : i32
    %c0_i32_0 = arith.constant 0 : i32
    %c0_i32_1 = arith.constant 0 : i32
    %c0_i32_2 = arith.constant 0 : i32
    return %c0_i32, %c0_i32_0, %c0_i32_1 : i32, i32, i32
  }
  func.func @transform_7(%arg0: i32) -> (i32, i32, i32) {
    %c0_i32 = arith.constant 0 : i32
    %c0_i32_0 = arith.constant 0 : i32
    %c0_i32_1 = arith.constant 0 : i32
    %c0_i32_2 = arith.constant 0 : i32
    return %c0_i32, %c0_i32_0, %c0_i32_1 : i32, i32, i32
  }
  func.func @transform_8(%arg0: i32) -> (i32, i32, i32) {
    %c0_i32 = arith.constant 0 : i32
    %c0_i32_0 = arith.constant 0 : i32
    %c0_i32_1 = arith.constant 0 : i32
    %c0_i32_2 = arith.constant 0 : i32
    return %c0_i32, %c0_i32_0, %c0_i32_1 : i32, i32, i32
  }
  func.func @transform_9(%arg0: i32) -> (i32, i32, i32) {
    %c0_i32 = arith.constant 0 : i32
    %c0_i32_0 = arith.constant 0 : i32
    %c0_i32_1 = arith.constant 0 : i32
    %c0_i32_2 = arith.constant 0 : i32
    return %c0_i32, %c0_i32_0, %c0_i32_1 : i32, i32, i32
  }
  func.func @transform_10(%arg0: i32) -> (i32, i32, i32) {
    %c0_i32 = arith.constant 0 : i32
    %c0_i32_0 = arith.constant 0 : i32
    %c0_i32_1 = arith.constant 0 : i32
    %c0_i32_2 = arith.constant 0 : i32
    return %c0_i32, %c0_i32_0, %c0_i32_1 : i32, i32, i32
  }
  func.func @transform_11(%arg0: i32) -> (i32, i32, i32) {
    %c0_i32 = arith.constant 0 : i32
    %c0_i32_0 = arith.constant 0 : i32
    %c0_i32_1 = arith.constant 0 : i32
    %c0_i32_2 = arith.constant 0 : i32
    return %c0_i32, %c0_i32_0, %c0_i32_1 : i32, i32, i32
  }
  func.func @transform_12(%arg0: i32) -> (i32, i32, i32) {
    %c0_i32 = arith.constant 0 : i32
    %c0_i32_0 = arith.constant 0 : i32
    %c0_i32_1 = arith.constant 0 : i32
    %c0_i32_2 = arith.constant 0 : i32
    return %c0_i32, %c0_i32_0, %c0_i32_1 : i32, i32, i32
  }
  func.func @transform_13(%arg0: i32) -> (i32, i32) {
    %c0_i32 = arith.constant 0 : i32
    %c0_i32_0 = arith.constant 0 : i32
    %c0_i32_1 = arith.constant 0 : i32
    return %c0_i32, %c0_i32_0 : i32, i32
  }
}

</mosaic_0001>

<llo_original>
// kernel: squeeze.1
$region0: #{squeeze.1}
  %s0 = inlined_call_operand.vmem [shape: f32[2,8], index: 0, kind: input, shape index: {}]
  %s1 = inlined_call_operand.vmem [shape: f32[1,16], index: 1, kind: output, shape index: {}]
  $region1: #{squeeze.1} parent=0
    #allocation0 [shape = 'u8[4096]{0}', space=vmem, size = 0x1000, scoped, tag = 'scoped mem for output reshape']
    #allocation1 [shape = 'u8[4096]{0}', space=vmem, size = 0x1000, scoped, tag = 'scoped mem for input reshape']
    %s3 = ssub.s32 4, 1
    %v4 = vld [vmem:[%s0] sm:%s3]
    %5 = vst [vmem:[#allocation1] sm:%s3] %v4
    %v6 = vld [vmem:[#allocation1] sm:$0x1]
    %vm7 = vcmask 64512
    %8 = vst.msk [vmem:[#allocation0] sm:$0x1] %vm7, %v6
    %s9 = scalar_lea.vmem [#allocation1], 1
    %v10 = vld [vmem:[%s9] sm:$0x1]
    %11 = vrot.lane.b32.xlu0 %v10, 8
    %v12 = vpop.permute.xlu0 %11
    %vm13 = vcmask 130112
    %14 = vst.msk [vmem:[#allocation0] sm:$0x1] %vm13, %v12
    %s16 = ssub.s32 2, 1
    %v17 = vld [vmem:[#allocation0] sm:%s16]
    %s19 = ssub.s32 2, 1
    %20 = vst [vmem:[%s1] sm:%s19] %v17

// kernel: encoder_apply.1
$region0: #{encoder_apply.1}
  #allocation0 [shape = 'u32[]', space=smem, size = 0x4, offset = 0x4, fixed_abs, tag = 'smem constant byte address 0x4 - core index']
  #allocation1 [shape = 'u32[72,128]{1,0:T(1,128)}', space=vmem, size = 0x9000, scoped, tag = 'internal scratch']
  %s0 = inlined_call_operand.hbm [shape: f32[16,32], index: 0, kind: input, shape index: {}]
  %s1 = inlined_call_operand.vmem [shape: f32[1,16], index: 1, kind: input, shape index: {}]
  %s2 = inlined_call_operand.hbm [shape: f32[16,16], index: 2, kind: input, shape index: {}]
  %s3 = inlined_call_operand.vmem [shape: f32[32,64], index: 3, kind: input, shape index: {}]
  %s4 = inlined_call_operand.vmem [shape: f32[64,32], index: 4, kind: input, shape index: {}]
  %s5 = inlined_call_operand.vmem [shape: f32[64,64], index: 5, kind: input, shape index: {}]
  %s6 = inlined_call_operand.vmem [shape: f32[2,32,96], index: 6, kind: input, shape index: {}]
  %s7 = inlined_call_operand.vmem [shape: f32[2,1,96], index: 7, kind: input, shape index: {}]
  %s8 = inlined_call_operand.vmem [shape: f32[2,32,32], index: 8, kind: input, shape index: {}]
  %s9 = inlined_call_operand.hbm [shape: f32[2,32,64], index: 9, kind: input, shape index: {}]
  %s10 = inlined_call_operand.vmem [shape: f32[2,64,32], index: 10, kind: input, shape index: {}]
  %s11 = inlined_call_operand.vmem [shape: f32[2,6,32], index: 11, kind: input, shape index: {}]
  %s12 = inlined_call_operand.vmem [shape: f32[2,1,64], index: 12, kind: input, shape index: {}]
  %s13 = inlined_call_operand.hbm [shape: f32[16,32], index: 13, kind: output, shape index: {}]
  %s14 = sld [smem:[#allocation0]]
  $region74: #{encoder_apply.1} parent=0
    _
  %s16 = ssub.s32 1, %s14
  %s17 = scalar_select 0, %s16, %s14
  $region1: #{encoder_apply.1} parent=0
    #allocation2 [shape = 'u8[8192]{0}', space=vmem, size = 0x2000, scoped, tag = 'input window, operand 0, single buffered']
    #allocation3 [shape = 's32[1]{0}', space=sflag, size = 0x4, scoped, tag = 'scoped memory for encoder_apply.1']
    #allocation4 [shape = 's32[1]{0}', space=sflag, size = 0x4, scoped, tag = 'scoped memory for encoder_apply.1']
    #allocation5 [shape = 'u8[8192]{0}', space=vmem, size = 0x2000, scoped, tag = 'input window, operand 2, single buffered']
    #allocation6 [shape = 's32[1]{0}', space=sflag, size = 0x4, scoped, tag = 'scoped memory for encoder_apply.1']
    #allocation7 [shape = 'u8[32768]{0}', space=vmem, size = 0x8000, scoped, tag = 'input window, operand 9, single buffered']
    #allocation8 [shape = 'u8[8192]{0}', space=vmem, size = 0x2000, scoped, tag = 'output window, operand 0, single buffered']
    %18 = vsyncpa [#allocation3], 0
    %19 = vsyncpa [#allocation6], 0
    %20 = vsyncpa [#allocation4], 0
    // Predicated region
    $region2: #{encoder_apply.1} parent=1 // pred_check
      _
    $region3: #{encoder_apply.1} parent=1 // pred_check_branch
      %22 = sbr.rel (0) target = $region5
    $region4: #{encoder_apply.1} parent=1 // pred_region
      %24 = vsyncadd [#allocation3], 0
      %s25 = sshll.u32 %s0, 4
      %s26 = int_to_ptr.hbm [resolvable:$true] %s25
      %s27 = sshll.u32 [#allocation2], 4
      %s28 = int_to_ptr.vmem [resolvable:$true] %s27
      %33 = dma.hbm_to_vmem [thread:$0]  %s26, 256, %s28, [#allocation3], 128, 128, 8
    $region5: #{encoder_apply.1} parent=1 // pred_fallthru
      _
    // Predicated region
    $region6: #{encoder_apply.1} parent=1 // pred_check
      _
    $region7: #{encoder_apply.1} parent=1 // pred_check_branch
      %35 = sbr.rel (0) target = $region9
    $region8: #{encoder_apply.1} parent=1 // pred_region
      _
    $region9: #{encoder_apply.1} parent=1 // pred_fallthru
      _
    // Predicated region
    $region10: #{encoder_apply.1} parent=1 // pred_check
      _
    $region11: #{encoder_apply.1} parent=1 // pred_check_branch
      %37 = sbr.rel (0) target = $region13
    $region12: #{encoder_apply.1} parent=1 // pred_region
      %39 = vsyncadd [#allocation6], 0
      %s40 = sshll.u32 %s2, 4
      %s41 = int_to_ptr.hbm [resolvable:$true] %s40
      %s42 = sshll.u32 [#allocation5], 4
      %s43 = int_to_ptr.vmem [resolvable:$true] %s42
      %48 = dma.hbm_to_vmem [thread:$0]  %s41, 256, %s43, [#allocation6], 128, 128, 8
    $region13: #{encoder_apply.1} parent=1 // pred_fallthru
      _
    // Predicated region
    $region14: #{encoder_apply.1} parent=1 // pred_check
      _
    $region15: #{encoder_apply.1} parent=1 // pred_check_branch
      %50 = sbr.rel (0) target = $region17
    $region16: #{encoder_apply.1} parent=1 // pred_region
      _
    $region17: #{encoder_apply.1} parent=1 // pred_fallthru
      _
    // Predicated region
    $region18: #{encoder_apply.1} parent=1 // pred_check
      _
    $region19: #{encoder_apply.1} parent=1 // pred_check_branch
      %52 = sbr.rel (0) target = $region21
    $region20: #{encoder_apply.1} parent=1 // pred_region
      _
    $region21: #{encoder_apply.1} parent=1 // pred_fallthru
      _
    // Predicated region
    $region22: #{encoder_apply.1} parent=1 // pred_check
      _
    $region23: #{encoder_apply.1} parent=1 // pred_check_branch
      %54 = sbr.rel (0) target = $region25
    $region24: #{encoder_apply.1} parent=1 // pred_region
      _
    $region25: #{encoder_apply.1} parent=1 // pred_fallthru
      _
    // Predicated region
    $region26: #{encoder_apply.1} parent=1 // pred_check
      _
    $region27: #{encoder_apply.1} parent=1 // pred_check_branch
      %56 = sbr.rel (0) target = $region29
    $region28: #{encoder_apply.1} parent=1 // pred_region
      _
    $region29: #{encoder_apply.1} parent=1 // pred_fallthru
      _
    // Predicated region
    $region30: #{encoder_apply.1} parent=1 // pred_check
      _
    $region31: #{encoder_apply.1} parent=1 // pred_check_branch
      %58 = sbr.rel (0) target = $region33
    $region32: #{encoder_apply.1} parent=1 // pred_region
      _
    $region33: #{encoder_apply.1} parent=1 // pred_fallthru
      _
    // Predicated region
    $region34: #{encoder_apply.1} parent=1 // pred_check
      _
    $region35: #{encoder_apply.1} parent=1 // pred_check_branch
      %60 = sbr.rel (0) target = $region37
    $region36: #{encoder_apply.1} parent=1 // pred_region
      _
    $region37: #{encoder_apply.1} parent=1 // pred_fallthru
      _
    // Predicated region
    $region38: #{encoder_apply.1} parent=1 // pred_check
      _
    $region39: #{encoder_apply.1} parent=1 // pred_check_branch
      %62 = sbr.rel (0) target = $region41
    $region40: #{encoder_apply.1} parent=1 // pred_region
      %64 = vsyncadd [#allocation6], 0
      %s65 = sshll.u32 %s9, 4
      %s66 = int_to_ptr.hbm [resolvable:$true] %s65
      %s67 = sshll.u32 [#allocation7], 4
      %s68 = int_to_ptr.vmem [resolvable:$true] %s67
      %73 = dma.hbm_to_vmem [thread:$0]  %s66, 1024, %s68, [#allocation6], 128, 128, 8
    $region41: #{encoder_apply.1} parent=1 // pred_fallthru
      _
    // Predicated region
    $region42: #{encoder_apply.1} parent=1 // pred_check
      _
    $region43: #{encoder_apply.1} parent=1 // pred_check_branch
      %75 = sbr.rel (0) target = $region45
    $region44: #{encoder_apply.1} parent=1 // pred_region
      _
    $region45: #{encoder_apply.1} parent=1 // pred_fallthru
      _
    // Predicated region
    $region46: #{encoder_apply.1} parent=1 // pred_check
      _
    $region47: #{encoder_apply.1} parent=1 // pred_check_branch
      %77 = sbr.rel (0) target = $region49
    $region48: #{encoder_apply.1} parent=1 // pred_region
      _
    $region49: #{encoder_apply.1} parent=1 // pred_fallthru
      _
    // Predicated region
    $region50: #{encoder_apply.1} parent=1 // pred_check
      _
    $region51: #{encoder_apply.1} parent=1 // pred_check_branch
      %79 = sbr.rel (0) target = $region53
    $region52: #{encoder_apply.1} parent=1 // pred_region
      _
    $region53: #{encoder_apply.1} parent=1 // pred_fallthru
      _
    // Predicated region
    $region54: #{encoder_apply.1} parent=1 // pred_check
      _
    $region55: #{encoder_apply.1} parent=1 // pred_check_branch
      %81 = sbr.rel (0) target = $region57
    $region56: #{encoder_apply.1} parent=1 // pred_region
      %83 = dma.done [#allocation3], 256
    $region57: #{encoder_apply.1} parent=1 // pred_fallthru
      _
    // Predicated region
    $region58: #{encoder_apply.1} parent=1 // pred_check
      _
    $region59: #{encoder_apply.1} parent=1 // pred_check_branch
      %85 = sbr.rel (0) target = $region61
    $region60: #{encoder_apply.1} parent=1 // pred_region
      %87 = dma.done [#allocation6], 256
    $region61: #{encoder_apply.1} parent=1 // pred_fallthru
      _
    // Predicated region
    $region62: #{encoder_apply.1} parent=1 // pred_check
      _
    $region63: #{encoder_apply.1} parent=1 // pred_check_branch
      %89 = sbr.rel (0) target = $region65
    $region64: #{encoder_apply.1} parent=1 // pred_region
      %91 = dma.done [#allocation6], 1024
    $region65: #{encoder_apply.1} parent=1 // pred_fallthru
      _
    %v92 = vld [vmem:[%s1] sm:$0x1]
    %vm93 = vcmp.gt.f32.partialorder %v92, 0.0
    %v94 = vsel %vm93, 0.0, -1e+09
    %v95 = vld [vmem:[#allocation5] sm:$0xff]
    %v96 = vld [vmem:[#allocation5 + $0x8] sm:$0xff]
    %v98 = vperm.slane %v94, 0
    %v100 = vadd.f32 %v95, %v98
    %v101 = vadd.f32 %v96, %v98
    %104 = vrot.lane.b32.xlu0 %v100, 16
    %v105 = vpop.permute.xlu0 %104
    %106 = vrot.lane.b32.xlu0 %v101, 16
    %v107 = vpop.permute.xlu0 %106
    %110 = vrot.lane.b32.xlu0 %v100, 32
    %v111 = vpop.permute.xlu0 %110
    %112 = vrot.lane.b32.xlu0 %v101, 32
    %v113 = vpop.permute.xlu0 %112
    %116 = vrot.lane.b32.xlu0 %v100, 48
    %v117 = vpop.permute.xlu0 %116
    %118 = vrot.lane.b32.xlu0 %v101, 48
    %v119 = vpop.permute.xlu0 %118
    %vm122 = vcmask 130048
    %v123 = vsel %vm122, %v100, %v105
    %v124 = vsel %vm122, %v101, %v107
    %vm125 = vcmask 261120
    %v126 = vsel %vm125, %v123, %v111
    %v127 = vsel %vm125, %v124, %v113
    %vm128 = vcmask 392192
    %v129 = vsel %vm128, %v126, %v117
    %v130 = vsel %vm128, %v127, %v119
    %v131 = vld [vmem:[%s3] sm:$0xff]
    %v132 = vld [vmem:[%s3 + $0x8] sm:$0xff]
    %v133 = vld [vmem:[%s3 + $0x10] sm:$0xff]
    %v134 = vld [vmem:[%s3 + $0x18] sm:$0xff]
    %v135 = vld [vmem:[%s4] sm:$0xff]
    %v136 = vld [vmem:[%s4 + $0x8] sm:$0xff]
    %v137 = vld [vmem:[%s4 + $0x10] sm:$0xff]
    %v138 = vld [vmem:[%s4 + $0x18] sm:$0xff]
    %v139 = vld [vmem:[%s4 + $0x20] sm:$0xff]
    %v140 = vld [vmem:[%s4 + $0x28] sm:$0xff]
    %v141 = vld [vmem:[%s4 + $0x30] sm:$0xff]
    %v142 = vld [vmem:[%s4 + $0x38] sm:$0xff]
    %v143 = vld [vmem:[%s5] sm:$0xff]
    %v144 = vld [vmem:[%s5 + $0x8] sm:$0xff]
    %v145 = vld [vmem:[%s5 + $0x10] sm:$0xff]
    %v146 = vld [vmem:[%s5 + $0x18] sm:$0xff]
    %v147 = vld [vmem:[%s5 + $0x20] sm:$0xff]
    %v148 = vld [vmem:[%s5 + $0x28] sm:$0xff]
    %v149 = vld [vmem:[%s5 + $0x30] sm:$0xff]
    %v150 = vld [vmem:[%s5 + $0x38] sm:$0xff]
    %v151 = vld [vmem:[#allocation2] sm:$0xff]
    %v152 = vld [vmem:[#allocation2 + $0x8] sm:$0xff]
    %v153 = vld [vmem:[%s6] sm:$0xff]
    %v154 = vld [vmem:[%s6 + $0x8] sm:$0xff]
    %v155 = vld [vmem:[%s6 + $0x10] sm:$0xff]
    %v156 = vld [vmem:[%s6 + $0x18] sm:$0xff]
    %v157 = vld [vmem:[%s7] sm:$0x1]
    %v158 = vld [vmem:[%s8] sm:$0xff]
    %v159 = vld [vmem:[%s8 + $0x8] sm:$0xff]
    %v160 = vld [vmem:[%s8 + $0x10] sm:$0xff]
    %v161 = vld [vmem:[%s8 + $0x18] sm:$0xff]
    %v162 = vld [vmem:[#allocation7] sm:$0xff]
    %v163 = vld [vmem:[#allocation7 + $0x8] sm:$0xff]
    %v164 = vld [vmem:[#allocation7 + $0x10] sm:$0xff]
    %v165 = vld [vmem:[#allocation7 + $0x18] sm:$0xff]
    %v166 = vld [vmem:[%s10] sm:$0xff]
    %v167 = vld [vmem:[%s10 + $0x8] sm:$0xff]
    %v168 = vld [vmem:[%s10 + $0x10] sm:$0xff]
    %v169 = vld [vmem:[%s10 + $0x18] sm:$0xff]
    %v170 = vld [vmem:[%s10 + $0x20] sm:$0xff]
    %v171 = vld [vmem:[%s10 + $0x28] sm:$0xff]
    %v172 = vld [vmem:[%s10 + $0x30] sm:$0xff]
    %v173 = vld [vmem:[%s10 + $0x38] sm:$0xff]
    %v174 = vld [vmem:[%s12] sm:$0x1]
    %v175 = vld [vmem:[%s11] sm:$0x3f]
    %v177 = vperm.slane %v157, 0
    %v180 = vsel %vm125, %v151, 0
    %v183 = vsel %vm125, %v152, 0
    %185 = vmatpush.msra.mxu0 0.0
    %186 = vmatpush.msra.mxu0 0.0
    %187 = vmatpush.msra.mxu0 0.0
    %188 = vmatpush.msra.mxu0 0.0
    %189 = vmatpush.msra.mxu0 0.0
    %190 = vmatpush.msra.mxu0 0.0
    %191 = vmatpush.msra.mxu0 0.0
    %192 = vmatpush.msra.mxu0 0.0
    %193 = vmatpush.msra.mxu0 0.0
    %194 = vmatpush.msra.mxu0 0.0
    %195 = vmatpush.msra.mxu0 0.0
    %196 = vmatpush.msra.mxu0 0.0
    %197 = vmatpush.msra.mxu0 %v156
    %198 = vmatpush.msra.mxu0 %v155
    %199 = vmatpush.msra.mxu0 %v154
    %200 = vmatpush.msra.mxu0 %v153
    %201 = vmatmul.f32.gmra.mxu0 %v180
    %v202 = vpop.f32.mrf.mxu0
    %v203 = vadd.f32 %v177, %v202
    %204 = vmatmul.f32.gmra.mxu0 %v183
    %v205 = vpop.f32.mrf.mxu0
    %v206 = vadd.f32 %v177, %v205
    %207 = vdwg.mxu0
    %210 = vrot.lane.b32.xlu0 %v203, 96
    %v211 = vpop.permute.xlu0 %210
    %212 = vrot.lane.b32.xlu0 %v206, 96
    %v213 = vpop.permute.xlu0 %212
    %216 = vxpose.xlu0.b32.start [1/16] %v211, 128
    %217 = vxpose.xlu0.b32.cont [2/16] %v213, 128
    %218 = vxpose.xlu0.b32.cont [3/16] 0.0, 128
    %219 = vxpose.xlu0.b32.cont [4/16] 0.0, 128
    %220 = vxpose.xlu0.b32.cont [5/16] 0.0, 128
    %221 = vxpose.xlu0.b32.cont [6/16] 0.0, 128
    %222 = vxpose.xlu0.b32.cont [7/16] 0.0, 128
    %223 = vxpose.xlu0.b32.cont [8/16] 0.0, 128
    %224 = vxpose.xlu0.b32.cont [9/16] 0.0, 128
    %225 = vxpose.xlu0.b32.cont [10/16] 0.0, 128
    %226 = vxpose.xlu0.b32.cont [11/16] 0.0, 128
    %227 = vxpose.xlu0.b32.cont [12/16] 0.0, 128
    %228 = vxpose.xlu0.b32.cont [13/16] 0.0, 128
    %229 = vxpose.xlu0.b32.cont [14/16] 0.0, 128
    %230 = vxpose.xlu0.b32.cont [15/16] 0.0, 128
    %231 = vxpose.xlu0.b32.end [16/16] 0.0, 128
    %v232 = vpop.trf.xlu0
    %v233 = vpop.trf.xlu0
    %v234 = vpop.trf.xlu0
    %v235 = vpop.trf.xlu0
    %v236 = vpop.trf.xlu0
    %v237 = vpop.trf.xlu0
    %v238 = vpop.trf.xlu0
    %v239 = vpop.trf.xlu0
    %v240 = vpop.trf.xlu0
    %v241 = vpop.trf.xlu0
    %v242 = vpop.trf.xlu0
    %v243 = vpop.trf.xlu0
    %v244 = vpop.trf.xlu0
    %v245 = vpop.trf.xlu0
    %v246 = vpop.trf.xlu0
    %v247 = vpop.trf.xlu0
    %252 = vrot.lane.b32.xlu0 %v232, 16
    %v253 = vpop.permute.xlu0 %252
    %254 = vrot.lane.b32.xlu0 %v233, 16
    %v255 = vpop.permute.xlu0 %254
    %256 = vrot.lane.b32.xlu0 %v234, 16
    %v257 = vpop.permute.xlu0 %256
    %258 = vrot.lane.b32.xlu0 %v235, 16
    %v259 = vpop.permute.xlu0 %258
    %264 = vrot.lane.b32.xlu0 %v232, 32
    %v265 = vpop.permute.xlu0 %264
    %266 = vrot.lane.b32.xlu0 %v233, 32
    %v267 = vpop.permute.xlu0 %266
    %268 = vrot.lane.b32.xlu0 %v234, 32
    %v269 = vpop.permute.xlu0 %268
    %270 = vrot.lane.b32.xlu0 %v235, 32
    %v271 = vpop.permute.xlu0 %270
    %276 = vrot.lane.b32.xlu0 %v232, 48
    %v277 = vpop.permute.xlu0 %276
    %278 = vrot.lane.b32.xlu0 %v233, 48
    %v279 = vpop.permute.xlu0 %278
    %280 = vrot.lane.b32.xlu0 %v234, 48
    %v281 = vpop.permute.xlu0 %280
    %282 = vrot.lane.b32.xlu0 %v235, 48
    %v283 = vpop.permute.xlu0 %282
    %v288 = vsel %vm122, %v232, %v253
    %v289 = vsel %vm122, %v233, %v255
    %v290 = vsel %vm122, %v234, %v257
    %v291 = vsel %vm122, %v235, %v259
    %v292 = vsel %vm125, %v288, %v265
    %v293 = vsel %vm125, %v289, %v267
    %v294 = vsel %vm125, %v290, %v269
    %v295 = vsel %vm125, %v291, %v271
    %v296 = vsel %vm128, %v292, %v277
    %v297 = vsel %vm128, %v293, %v279
    %v298 = vsel %vm128, %v294, %v281
    %v299 = vsel %vm128, %v295, %v283
    %v300 = vmul.f32 %v296, %v131
    %v301 = vmul.f32 %v297, %v132
    %v302 = vmul.f32 %v298, %v133
    %v303 = vmul.f32 %v299, %v134
    %312 = vrot.lane.b32.xlu0 %v135, 64
    %v313 = vpop.permute.xlu0 %312
    %314 = vrot.lane.b32.xlu0 %v136, 64
    %v315 = vpop.permute.xlu0 %314
    %316 = vrot.lane.b32.xlu0 %v137, 64
    %v317 = vpop.permute.xlu0 %316
    %318 = vrot.lane.b32.xlu0 %v138, 64
    %v319 = vpop.permute.xlu0 %318
    %320 = vrot.lane.b32.xlu0 %v139, 64
    %v321 = vpop.permute.xlu0 %320
    %322 = vrot.lane.b32.xlu0 %v140, 64
    %v323 = vpop.permute.xlu0 %322
    %324 = vrot.lane.b32.xlu0 %v141, 64
    %v325 = vpop.permute.xlu0 %324
    %326 = vrot.lane.b32.xlu0 %v142, 64
    %v327 = vpop.permute.xlu0 %326
    %v336 = vmul.f32 %v203, %v313
    %v337 = vmul.f32 %v206, %v315
    %v338 = vmul.f32 %v203, %v317
    %v339 = vmul.f32 %v206, %v319
    %v340 = vmul.f32 %v203, %v321
    %v341 = vmul.f32 %v206, %v323
    %v342 = vmul.f32 %v203, %v325
    %v343 = vmul.f32 %v206, %v327
    %v344 = vsel %vm125, %v203, 0
    %v346 = vsel %vm125, %v206, 0
    %348 = vmatpush.msra.mxu0 0.0
    %349 = vmatpush.msra.mxu0 0.0
    %350 = vmatpush.msra.mxu0 0.0
    %351 = vmatpush.msra.mxu0 0.0
    %352 = vmatpush.msra.mxu0 0.0
    %353 = vmatpush.msra.mxu0 0.0
    %354 = vmatpush.msra.mxu0 0.0
    %355 = vmatpush.msra.mxu0 0.0
    %356 = vmatpush.msra.mxu0 0.0
    %357 = vmatpush.msra.mxu0 0.0
    %358 = vmatpush.msra.mxu0 0.0
    %359 = vmatpush.msra.mxu0 0.0
    %360 = vmatpush.msra.mxu0 %v303
    %361 = vmatpush.msra.mxu0 %v302
    %362 = vmatpush.msra.mxu0 %v301
    %363 = vmatpush.msra.mxu0 %v300
    %364 = vmatmul.f32.gmra.mxu0 %v344
    %v365 = vpop.f32.mrf.mxu0
    %v366 = vadd.f32 %v129, %v365
    %367 = vmatmul.f32.gmra.mxu0 %v346
    %v368 = vpop.f32.mrf.mxu0
    %v369 = vadd.f32 %v130, %v368
    %370 = vdwg.mxu0
    %vm371 = vcmask 523264
    %v372 = vsel %vm371, %v366, -inf
    %373 = vmax.xlane.f32.xlu0 %v372
    %v374 = vpop.xlane.xlu0 %373
    %v375 = vsel %vm371, %v369, -inf
    %376 = vmax.xlane.f32.xlu0 %v375
    %v377 = vpop.xlane.xlu0 %376
    %v378 = vsub.f32 %v366, %v374
    %v379 = vsub.f32 %v369, %v377
    %v380 = vmul.f32 %v378, 1.442695
    %v381 = vpow.pop %v380
    %v382 = vmul.f32 %v379, 1.442695
    %v383 = vpow.pop %v382
    %v385 = vsel %vm371, %v381, 0
    %v388 = vsel %vm371, %v383, 0
    %390 = vmatpush.msra.mxu0 0.0
    %391 = vmatpush.msra.mxu0 0.0
    %392 = vmatpush.msra.mxu0 0.0
    %393 = vmatpush.msra.mxu0 0.0
    %394 = vmatpush.msra.mxu0 0.0
    %395 = vmatpush.msra.mxu0 0.0
    %396 = vmatpush.msra.mxu0 0.0
    %397 = vmatpush.msra.mxu0 0.0
    %398 = vmatpush.msra.mxu0 %v150
    %399 = vmatpush.msra.mxu0 %v149
    %400 = vmatpush.msra.mxu0 %v148
    %401 = vmatpush.msra.mxu0 %v147
    %402 = vmatpush.msra.mxu0 %v146
    %403 = vmatpush.msra.mxu0 %v145
    %404 = vmatpush.msra.mxu0 %v144
    %405 = vmatpush.msra.mxu0 %v143
    %406 = vmatmul.f32.gmra.mxu0 %v385
    %v407 = vpop.f32.mrf.mxu0
    %v408 = vadd.f32 0.0, %v407
    %409 = vmatmul.f32.gmra.mxu0 %v388
    %v410 = vpop.f32.mrf.mxu0
    %v411 = vadd.f32 0.0, %v410
    %412 = vdwg.mxu0
    %v413 = vrcp.pop %v408
    %v414 = vrcp.pop %v411
    %v415 = vmul.f32 %v381, %v413
    %v416 = vmul.f32 %v383, %v414
    %425 = vrot.lane.b32.xlu0 %v336, 64
    %v426 = vpop.permute.xlu0 %425
    %427 = vrot.lane.b32.xlu0 %v337, 64
    %v428 = vpop.permute.xlu0 %427
    %429 = vrot.lane.b32.xlu0 %v338, 64
    %v430 = vpop.permute.xlu0 %429
    %431 = vrot.lane.b32.xlu0 %v339, 64
    %v432 = vpop.permute.xlu0 %431
    %433 = vrot.lane.b32.xlu0 %v340, 64
    %v434 = vpop.permute.xlu0 %433
    %435 = vrot.lane.b32.xlu0 %v341, 64
    %v436 = vpop.permute.xlu0 %435
    %437 = vrot.lane.b32.xlu0 %v342, 64
    %v438 = vpop.permute.xlu0 %437
    %439 = vrot.lane.b32.xlu0 %v343, 64
    %v440 = vpop.permute.xlu0 %439
    %v450 = vsel %vm371, %v415, 0
    %v453 = vsel %vm371, %v416, 0
    %455 = vmatpush.msra.mxu0 0.0
    %456 = vmatpush.msra.mxu0 0.0
    %457 = vmatpush.msra.mxu0 0.0
    %458 = vmatpush.msra.mxu0 0.0
    %459 = vmatpush.msra.mxu0 0.0
    %460 = vmatpush.msra.mxu0 0.0
    %461 = vmatpush.msra.mxu0 0.0
    %462 = vmatpush.msra.mxu0 0.0
    %463 = vmatpush.msra.mxu0 %v440
    %464 = vmatpush.msra.mxu0 %v438
    %465 = vmatpush.msra.mxu0 %v436
    %466 = vmatpush.msra.mxu0 %v434
    %467 = vmatpush.msra.mxu0 %v432
    %468 = vmatpush.msra.mxu0 %v430
    %469 = vmatpush.msra.mxu0 %v428
    %470 = vmatpush.msra.mxu0 %v426
    %471 = vmatmul.f32.gmra.mxu0 %v450
    %v472 = vpop.f32.mrf.mxu0
    %v473 = vadd.f32 0.0, %v472
    %474 = vmatmul.f32.gmra.mxu0 %v453
    %v475 = vpop.f32.mrf.mxu0
    %v476 = vadd.f32 0.0, %v475
    %477 = vdwg.mxu0
    %v478 = vperm.slane %v175, 0
    %v480 = vsel %vm125, %v473, 0
    %v483 = vsel %vm125, %v476, 0
    %485 = vmatpush.msra.mxu0 0.0
    %486 = vmatpush.msra.mxu0 0.0
    %487 = vmatpush.msra.mxu0 0.0
    %488 = vmatpush.msra.mxu0 0.0
    %489 = vmatpush.msra.mxu0 0.0
    %490 = vmatpush.msra.mxu0 0.0
    %491 = vmatpush.msra.mxu0 0.0
    %492 = vmatpush.msra.mxu0 0.0
    %493 = vmatpush.msra.mxu0 0.0
    %494 = vmatpush.msra.mxu0 0.0
    %495 = vmatpush.msra.mxu0 0.0
    %496 = vmatpush.msra.mxu0 0.0
    %497 = vmatpush.msra.mxu0 %v161
    %498 = vmatpush.msra.mxu0 %v160
    %499 = vmatpush.msra.mxu0 %v159
    %500 = vmatpush.msra.mxu0 %v158
    %501 = vmatmul.f32.gmra.mxu0 %v480
    %v502 = vpop.f32.mrf.mxu0
    %v503 = vadd.f32 %v478, %v502
    %504 = vmatmul.f32.gmra.mxu0 %v483
    %v505 = vpop.f32.mrf.mxu0
    %v506 = vadd.f32 %v478, %v505
    %507 = vdwg.mxu0
    %v508 = vadd.f32 %v151, %v503
    %v509 = vadd.f32 %v152, %v506
    %v510 = vsel %vm125, %v508, 0.0
    %511 = vadd.xlane.f32.xlu0 %v510
    %v512 = vpop.xlane.xlu0 %511
    %v513 = vsel %vm125, %v509, 0.0
    %514 = vadd.xlane.f32.xlu0 %v513
    %v515 = vpop.xlane.xlu0 %514
    %v516 = vrcp.pop 32.0
    %v517 = vmul.f32 32.0, %v516
    %v518 = vsub.f32 1.0, %v517
    %v519 = vmul.f32 %v516, %v518
    %v520 = vadd.f32 %v516, %v519
    %vm521 = vweird.f32 %v516
    %v522 = vsel %vm521, %v516, %v520
    %v523 = vmul.f32 %v512, %v522
    %v524 = vmul.f32 %v515, %v522
    %v525 = vsub.f32 %v508, %v523
    %v526 = vsub.f32 %v509, %v524
    %v527 = vmul.f32 %v525, %v525
    %v528 = vmul.f32 %v526, %v526
    %v529 = vsel %vm125, %v527, 0.0
    %530 = vadd.xlane.f32.xlu0 %v529
    %v531 = vpop.xlane.xlu0 %530
    %v532 = vsel %vm125, %v528, 0.0
    %533 = vadd.xlane.f32.xlu0 %v532
    %v534 = vpop.xlane.xlu0 %533
    %v535 = vmul.f32 %v531, %v522
    %v536 = vmul.f32 %v534, %v522
    %v537 = vadd.f32 %v535, 1e-05
    %v538 = vadd.f32 %v536, 1e-05
    %v539 = vrsqrt.pop %v537
    %v540 = vmul.f32 %v539, %v537
    %v541 = vmul.f32 %v540, %v539
    %v542 = vmul.f32 0.5, %v541
    %v543 = vsub.f32 1.5, %v542
    %v544 = vmul.f32 %v539, %v543
    %vm545 = vweird.f32 %v537
    %vm546 = vweird.f32 %v539
    %vm547 = vmor %vm545, %vm546
    %v548 = vsel %vm547, %v539, %v544
    %v549 = vrsqrt.pop %v538
    %v550 = vmul.f32 %v549, %v538
    %v551 = vmul.f32 %v550, %v549
    %v552 = vmul.f32 0.5, %v551
    %v553 = vsub.f32 1.5, %v552
    %v554 = vmul.f32 %v549, %v553
    %vm555 = vweird.f32 %v538
    %vm556 = vweird.f32 %v549
    %vm557 = vmor %vm555, %vm556
    %v558 = vsel %vm557, %v549, %v554
    %v559 = vmul.f32 %v525, %v548
    %v560 = vmul.f32 %v526, %v558
    %v561 = vperm.slane %v175, 2
    %v562 = vmul.f32 %v559, %v561
    %v563 = vmul.f32 %v560, %v561
    %v564 = vperm.slane %v175, 3
    %v565 = vadd.f32 %v562, %v564
    %v566 = vadd.f32 %v563, %v564
    %v568 = vperm.slane %v174, 0
    %v571 = vsel %vm125, %v565, 0
    %v574 = vsel %vm125, %v566, 0
    %576 = vmatpush.msra.mxu0 0.0
    %577 = vmatpush.msra.mxu0 0.0
    %578 = vmatpush.msra.mxu0 0.0
    %579 = vmatpush.msra.mxu0 0.0
    %580 = vmatpush.msra.mxu0 0.0
    %581 = vmatpush.msra.mxu0 0.0
    %582 = vmatpush.msra.mxu0 0.0
    %583 = vmatpush.msra.mxu0 0.0
    %584 = vmatpush.msra.mxu0 0.0
    %585 = vmatpush.msra.mxu0 0.0
    %586 = vmatpush.msra.mxu0 0.0
    %587 = vmatpush.msra.mxu0 0.0
    %588 = vmatpush.msra.mxu0 %v165
    %589 = vmatpush.msra.mxu0 %v164
    %590 = vmatpush.msra.mxu0 %v163
    %591 = vmatpush.msra.mxu0 %v162
    %592 = vmatmul.f32.gmra.mxu0 %v571
    %v593 = vpop.f32.mrf.mxu0
    %v594 = vadd.f32 %v568, %v593
    %595 = vmatmul.f32.gmra.mxu0 %v574
    %v596 = vpop.f32.mrf.mxu0
    %v597 = vadd.f32 %v568, %v596
    %598 = vdwg.mxu0
    %v599 = vmax.f32 %v594, 0.0
    %v600 = vmax.f32 %v597, 0.0
    %v601 = vperm.slane %v175, 1
    %v603 = vsel %vm371, %v599, 0
    %v606 = vsel %vm371, %v600, 0
    %608 = vmatpush.msra.mxu0 0.0
    %609 = vmatpush.msra.mxu0 0.0
    %610 = vmatpush.msra.mxu0 0.0
    %611 = vmatpush.msra.mxu0 0.0
    %612 = vmatpush.msra.mxu0 0.0
    %613 = vmatpush.msra.mxu0 0.0
    %614 = vmatpush.msra.mxu0 0.0
    %615 = vmatpush.msra.mxu0 0.0
    %616 = vmatpush.msra.mxu0 %v173
    %617 = vmatpush.msra.mxu0 %v172
    %618 = vmatpush.msra.mxu0 %v171
    %619 = vmatpush.msra.mxu0 %v170
    %620 = vmatpush.msra.mxu0 %v169
    %621 = vmatpush.msra.mxu0 %v168
    %622 = vmatpush.msra.mxu0 %v167
    %623 = vmatpush.msra.mxu0 %v166
    %624 = vmatmul.f32.gmra.mxu0 %v603
    %v625 = vpop.f32.mrf.mxu0
    %v626 = vadd.f32 %v601, %v625
    %627 = vmatmul.f32.gmra.mxu0 %v606
    %v628 = vpop.f32.mrf.mxu0
    %v629 = vadd.f32 %v601, %v628
    %630 = vdwg.mxu0
    %v631 = vadd.f32 %v565, %v626
    %v632 = vadd.f32 %v566, %v629
    %v633 = vsel %vm125, %v631, 0.0
    %634 = vadd.xlane.f32.xlu0 %v633
    %v635 = vpop.xlane.xlu0 %634
    %v636 = vsel %vm125, %v632, 0.0
    %637 = vadd.xlane.f32.xlu0 %v636
    %v638 = vpop.xlane.xlu0 %637
    %v639 = vmul.f32 %v635, %v522
    %v640 = vmul.f32 %v638, %v522
    %v641 = vsub.f32 %v631, %v639
    %v642 = vsub.f32 %v632, %v640
    %v643 = vmul.f32 %v641, %v641
    %v644 = vmul.f32 %v642, %v642
    %v645 = vsel %vm125, %v643, 0.0
    %646 = vadd.xlane.f32.xlu0 %v645
    %v647 = vpop.xlane.xlu0 %646
    %v648 = vsel %vm125, %v644, 0.0
    %649 = vadd.xlane.f32.xlu0 %v648
    %v650 = vpop.xlane.xlu0 %649
    %v651 = vmul.f32 %v647, %v522
    %v652 = vmul.f32 %v650, %v522
    %v653 = vadd.f32 %v651, 1e-05
    %v654 = vadd.f32 %v652, 1e-05
    %v655 = vrsqrt.pop %v653
    %v656 = vmul.f32 %v655, %v653
    %v657 = vmul.f32 %v656, %v655
    %v658 = vmul.f32 0.5, %v657
    %v659 = vsub.f32 1.5, %v658
    %v660 = vmul.f32 %v655, %v659
    %vm661 = vweird.f32 %v653
    %vm662 = vweird.f32 %v655
    %vm663 = vmor %vm661, %vm662
    %v664 = vsel %vm663, %v655, %v660
    %v665 = vrsqrt.pop %v654
    %v666 = vmul.f32 %v665, %v654
    %v667 = vmul.f32 %v666, %v665
    %v668 = vmul.f32 0.5, %v667
    %v669 = vsub.f32 1.5, %v668
    %v670 = vmul.f32 %v665, %v669
    %vm671 = vweird.f32 %v654
    %vm672 = vweird.f32 %v665
    %vm673 = vmor %vm671, %vm672
    %v674 = vsel %vm673, %v665, %v670
    %v675 = vmul.f32 %v641, %v664
    %v676 = vmul.f32 %v642, %v674
    %v677 = vperm.slane %v175, 4
    %v678 = vmul.f32 %v675, %v677
    %v679 = vmul.f32 %v676, %v677
    %v680 = vperm.slane %v175, 5
    %v681 = vadd.f32 %v678, %v680
    %v682 = vadd.f32 %v679, %v680
    %s683 = scalar_lea.vmem %s6, 32
    %v684 = vld [vmem:[%s683] sm:$0xff]
    %v685 = vld [vmem:[%s683 + $0x8] sm:$0xff]
    %v686 = vld [vmem:[%s683 + $0x10] sm:$0xff]
    %v687 = vld [vmem:[%s683 + $0x18] sm:$0xff]
    %s688 = scalar_lea.vmem %s7, 1
    %v689 = vld [vmem:[%s688] sm:$0x1]
    %s690 = scalar_lea.vmem %s8, 32
    %v691 = vld [vmem:[%s690] sm:$0xff]
    %v692 = vld [vmem:[%s690 + $0x8] sm:$0xff]
    %v693 = vld [vmem:[%s690 + $0x10] sm:$0xff]
    %v694 = vld [vmem:[%s690 + $0x18] sm:$0xff]
    %s695 = scalar_lea.vmem [#allocation7], 32
    %v696 = vld [vmem:[%s695] sm:$0xff]
    %v697 = vld [vmem:[%s695 + $0x8] sm:$0xff]
    %v698 = vld [vmem:[%s695 + $0x10] sm:$0xff]
    %v699 = vld [vmem:[%s695 + $0x18] sm:$0xff]
    %s700 = scalar_lea.vmem %s10, 64
    %v701 = vld [vmem:[%s700] sm:$0xff]
    %v702 = vld [vmem:[%s700 + $0x8] sm:$0xff]
    %v703 = vld [vmem:[%s700 + $0x10] sm:$0xff]
    %v704 = vld [vmem:[%s700 + $0x18] sm:$0xff]
    %v705 = vld [vmem:[%s700 + $0x20] sm:$0xff]
    %v706 = vld [vmem:[%s700 + $0x28] sm:$0xff]
    %v707 = vld [vmem:[%s700 + $0x30] sm:$0xff]
    %v708 = vld [vmem:[%s700 + $0x38] sm:$0xff]
    %s709 = scalar_lea.vmem %s12, 1
    %v710 = vld [vmem:[%s709] sm:$0x1]
    %s711 = scalar_lea.vmem %s11, 8
    %v712 = vld [vmem:[%s711] sm:$0x3f]
    %v714 = vperm.slane %v689, 0
    %v717 = vsel %vm125, %v681, 0
    %v720 = vsel %vm125, %v682, 0
    %722 = vmatpush.msra.mxu0 0.0
    %723 = vmatpush.msra.mxu0 0.0
    %724 = vmatpush.msra.mxu0 0.0
    %725 = vmatpush.msra.mxu0 0.0
    %726 = vmatpush.msra.mxu0 0.0
    %727 = vmatpush.msra.mxu0 0.0
    %728 = vmatpush.msra.mxu0 0.0
    %729 = vmatpush.msra.mxu0 0.0
    %730 = vmatpush.msra.mxu0 0.0
    %731 = vmatpush.msra.mxu0 0.0
    %732 = vmatpush.msra.mxu0 0.0
    %733 = vmatpush.msra.mxu0 0.0
    %734 = vmatpush.msra.mxu0 %v687
    %735 = vmatpush.msra.mxu0 %v686
    %736 = vmatpush.msra.mxu0 %v685
    %737 = vmatpush.msra.mxu0 %v684
    %738 = vmatmul.f32.gmra.mxu0 %v717
    %v739 = vpop.f32.mrf.mxu0
    %v740 = vadd.f32 %v714, %v739
    %741 = vmatmul.f32.gmra.mxu0 %v720
    %v742 = vpop.f32.mrf.mxu0
    %v743 = vadd.f32 %v714, %v742
    %744 = vdwg.mxu0
    %747 = vrot.lane.b32.xlu0 %v740, 96
    %v748 = vpop.permute.xlu0 %747
    %749 = vrot.lane.b32.xlu0 %v743, 96
    %v750 = vpop.permute.xlu0 %749
    %753 = vxpose.xlu0.b32.start [1/16] %v748, 128
    %754 = vxpose.xlu0.b32.cont [2/16] %v750, 128
    %755 = vxpose.xlu0.b32.cont [3/16] 0.0, 128
    %756 = vxpose.xlu0.b32.cont [4/16] 0.0, 128
    %757 = vxpose.xlu0.b32.cont [5/16] 0.0, 128
    %758 = vxpose.xlu0.b32.cont [6/16] 0.0, 128
    %759 = vxpose.xlu0.b32.cont [7/16] 0.0, 128
    %760 = vxpose.xlu0.b32.cont [8/16] 0.0, 128
    %761 = vxpose.xlu0.b32.cont [9/16] 0.0, 128
    %762 = vxpose.xlu0.b32.cont [10/16] 0.0, 128
    %763 = vxpose.xlu0.b32.cont [11/16] 0.0, 128
    %764 = vxpose.xlu0.b32.cont [12/16] 0.0, 128
    %765 = vxpose.xlu0.b32.cont [13/16] 0.0, 128
    %766 = vxpose.xlu0.b32.cont [14/16] 0.0, 128
    %767 = vxpose.xlu0.b32.cont [15/16] 0.0, 128
    %768 = vxpose.xlu0.b32.end [16/16] 0.0, 128
    %v769 = vpop.trf.xlu0
    %v770 = vpop.trf.xlu0
    %v771 = vpop.trf.xlu0
    %v772 = vpop.trf.xlu0
    %v773 = vpop.trf.xlu0
    %v774 = vpop.trf.xlu0
    %v775 = vpop.trf.xlu0
    %v776 = vpop.trf.xlu0
    %v777 = vpop.trf.xlu0
    %v778 = vpop.trf.xlu0
    %v779 = vpop.trf.xlu0
    %v780 = vpop.trf.xlu0
    %v781 = vpop.trf.xlu0
    %v782 = vpop.trf.xlu0
    %v783 = vpop.trf.xlu0
    %v784 = vpop.trf.xlu0
    %789 = vrot.lane.b32.xlu0 %v769, 16
    %v790 = vpop.permute.xlu0 %789
    %791 = vrot.lane.b32.xlu0 %v770, 16
    %v792 = vpop.permute.xlu0 %791
    %793 = vrot.lane.b32.xlu0 %v771, 16
    %v794 = vpop.permute.xlu0 %793
    %795 = vrot.lane.b32.xlu0 %v772, 16
    %v796 = vpop.permute.xlu0 %795
    %801 = vrot.lane.b32.xlu0 %v769, 32
    %v802 = vpop.permute.xlu0 %801
    %803 = vrot.lane.b32.xlu0 %v770, 32
    %v804 = vpop.permute.xlu0 %803
    %805 = vrot.lane.b32.xlu0 %v771, 32
    %v806 = vpop.permute.xlu0 %805
    %807 = vrot.lane.b32.xlu0 %v772, 32
    %v808 = vpop.permute.xlu0 %807
    %813 = vrot.lane.b32.xlu0 %v769, 48
    %v814 = vpop.permute.xlu0 %813
    %815 = vrot.lane.b32.xlu0 %v770, 48
    %v816 = vpop.permute.xlu0 %815
    %817 = vrot.lane.b32.xlu0 %v771, 48
    %v818 = vpop.permute.xlu0 %817
    %819 = vrot.lane.b32.xlu0 %v772, 48
    %v820 = vpop.permute.xlu0 %819
    %v825 = vsel %vm122, %v769, %v790
    %v826 = vsel %vm122, %v770, %v792
    %v827 = vsel %vm122, %v771, %v794
    %v828 = vsel %vm122, %v772, %v796
    %v829 = vsel %vm125, %v825, %v802
    %v830 = vsel %vm125, %v826, %v804
    %v831 = vsel %vm125, %v827, %v806
    %v832 = vsel %vm125, %v828, %v808
    %v833 = vsel %vm128, %v829, %v814
    %v834 = vsel %vm128, %v830, %v816
    %v835 = vsel %vm128, %v831, %v818
    %v836 = vsel %vm128, %v832, %v820
    %v837 = vmul.f32 %v833, %v131
    %v838 = vmul.f32 %v834, %v132
    %v839 = vmul.f32 %v835, %v133
    %v840 = vmul.f32 %v836, %v134
    %v841 = vmul.f32 %v740, %v313
    %v842 = vmul.f32 %v743, %v315
    %v843 = vmul.f32 %v740, %v317
    %v844 = vmul.f32 %v743, %v319
    %v845 = vmul.f32 %v740, %v321
    %v846 = vmul.f32 %v743, %v323
    %v847 = vmul.f32 %v740, %v325
    %v848 = vmul.f32 %v743, %v327
    %v849 = vsel %vm125, %v740, 0
    %v851 = vsel %vm125, %v743, 0
    %853 = vmatpush.msra.mxu0 0.0
    %854 = vmatpush.msra.mxu0 0.0
    %855 = vmatpush.msra.mxu0 0.0
    %856 = vmatpush.msra.mxu0 0.0
    %857 = vmatpush.msra.mxu0 0.0
    %858 = vmatpush.msra.mxu0 0.0
    %859 = vmatpush.msra.mxu0 0.0
    %860 = vmatpush.msra.mxu0 0.0
    %861 = vmatpush.msra.mxu0 0.0
    %862 = vmatpush.msra.mxu0 0.0
    %863 = vmatpush.msra.mxu0 0.0
    %864 = vmatpush.msra.mxu0 0.0
    %865 = vmatpush.msra.mxu0 %v840
    %866 = vmatpush.msra.mxu0 %v839
    %867 = vmatpush.msra.mxu0 %v838
    %868 = vmatpush.msra.mxu0 %v837
    %869 = vmatmul.f32.gmra.mxu0 %v849
    %v870 = vpop.f32.mrf.mxu0
    %v871 = vadd.f32 %v129, %v870
    %872 = vmatmul.f32.gmra.mxu0 %v851
    %v873 = vpop.f32.mrf.mxu0
    %v874 = vadd.f32 %v130, %v873
    %875 = vdwg.mxu0
    %v876 = vsel %vm371, %v871, -inf
    %877 = vmax.xlane.f32.xlu0 %v876
    %v878 = vpop.xlane.xlu0 %877
    %v879 = vsel %vm371, %v874, -inf
    %880 = vmax.xlane.f32.xlu0 %v879
    %v881 = vpop.xlane.xlu0 %880
    %v882 = vsub.f32 %v871, %v878
    %v883 = vsub.f32 %v874, %v881
    %v884 = vmul.f32 %v882, 1.442695
    %v885 = vpow.pop %v884
    %v886 = vmul.f32 %v883, 1.442695
    %v887 = vpow.pop %v886
    %v889 = vsel %vm371, %v885, 0
    %v892 = vsel %vm371, %v887, 0
    %894 = vmatpush.msra.mxu0 0.0
    %895 = vmatpush.msra.mxu0 0.0
    %896 = vmatpush.msra.mxu0 0.0
    %897 = vmatpush.msra.mxu0 0.0
    %898 = vmatpush.msra.mxu0 0.0
    %899 = vmatpush.msra.mxu0 0.0
    %900 = vmatpush.msra.mxu0 0.0
    %901 = vmatpush.msra.mxu0 0.0
    %902 = vmatpush.msra.mxu0 %v150
    %903 = vmatpush.msra.mxu0 %v149
    %904 = vmatpush.msra.mxu0 %v148
    %905 = vmatpush.msra.mxu0 %v147
    %906 = vmatpush.msra.mxu0 %v146
    %907 = vmatpush.msra.mxu0 %v145
    %908 = vmatpush.msra.mxu0 %v144
    %909 = vmatpush.msra.mxu0 %v143
    %910 = vmatmul.f32.gmra.mxu0 %v889
    %v911 = vpop.f32.mrf.mxu0
    %v912 = vadd.f32 0.0, %v911
    %913 = vmatmul.f32.gmra.mxu0 %v892
    %v914 = vpop.f32.mrf.mxu0
    %v915 = vadd.f32 0.0, %v914
    %916 = vdwg.mxu0
    %v917 = vrcp.pop %v912
    %v918 = vrcp.pop %v915
    %v919 = vmul.f32 %v885, %v917
    %v920 = vmul.f32 %v887, %v918
    %929 = vrot.lane.b32.xlu0 %v841, 64
    %v930 = vpop.permute.xlu0 %929
    %931 = vrot.lane.b32.xlu0 %v842, 64
    %v932 = vpop.permute.xlu0 %931
    %933 = vrot.lane.b32.xlu0 %v843, 64
    %v934 = vpop.permute.xlu0 %933
    %935 = vrot.lane.b32.xlu0 %v844, 64
    %v936 = vpop.permute.xlu0 %935
    %937 = vrot.lane.b32.xlu0 %v845, 64
    %v938 = vpop.permute.xlu0 %937
    %939 = vrot.lane.b32.xlu0 %v846, 64
    %v940 = vpop.permute.xlu0 %939
    %941 = vrot.lane.b32.xlu0 %v847, 64
    %v942 = vpop.permute.xlu0 %941
    %943 = vrot.lane.b32.xlu0 %v848, 64
    %v944 = vpop.permute.xlu0 %943
    %v954 = vsel %vm371, %v919, 0
    %v957 = vsel %vm371, %v920, 0
    %959 = vmatpush.msra.mxu0 0.0
    %960 = vmatpush.msra.mxu0 0.0
    %961 = vmatpush.msra.mxu0 0.0
    %962 = vmatpush.msra.mxu0 0.0
    %963 = vmatpush.msra.mxu0 0.0
    %964 = vmatpush.msra.mxu0 0.0
    %965 = vmatpush.msra.mxu0 0.0
    %966 = vmatpush.msra.mxu0 0.0
    %967 = vmatpush.msra.mxu0 %v944
    %968 = vmatpush.msra.mxu0 %v942
    %969 = vmatpush.msra.mxu0 %v940
    %970 = vmatpush.msra.mxu0 %v938
    %971 = vmatpush.msra.mxu0 %v936
    %972 = vmatpush.msra.mxu0 %v934
    %973 = vmatpush.msra.mxu0 %v932
    %974 = vmatpush.msra.mxu0 %v930
    %975 = vmatmul.f32.gmra.mxu0 %v954
    %v976 = vpop.f32.mrf.mxu0
    %v977 = vadd.f32 0.0, %v976
    %978 = vmatmul.f32.gmra.mxu0 %v957
    %v979 = vpop.f32.mrf.mxu0
    %v980 = vadd.f32 0.0, %v979
    %981 = vdwg.mxu0
    %v982 = vperm.slane %v712, 0
    %v984 = vsel %vm125, %v977, 0
    %v987 = vsel %vm125, %v980, 0
    %989 = vmatpush.msra.mxu0 0.0
    %990 = vmatpush.msra.mxu0 0.0
    %991 = vmatpush.msra.mxu0 0.0
    %992 = vmatpush.msra.mxu0 0.0
    %993 = vmatpush.msra.mxu0 0.0
    %994 = vmatpush.msra.mxu0 0.0
    %995 = vmatpush.msra.mxu0 0.0
    %996 = vmatpush.msra.mxu0 0.0
    %997 = vmatpush.msra.mxu0 0.0
    %998 = vmatpush.msra.mxu0 0.0
    %999 = vmatpush.msra.mxu0 0.0
    %1000 = vmatpush.msra.mxu0 0.0
    %1001 = vmatpush.msra.mxu0 %v694
    %1002 = vmatpush.msra.mxu0 %v693
    %1003 = vmatpush.msra.mxu0 %v692
    %1004 = vmatpush.msra.mxu0 %v691
    %1005 = vmatmul.f32.gmra.mxu0 %v984
    %v1006 = vpop.f32.mrf.mxu0
    %v1007 = vadd.f32 %v982, %v1006
    %1008 = vmatmul.f32.gmra.mxu0 %v987
    %v1009 = vpop.f32.mrf.mxu0
    %v1010 = vadd.f32 %v982, %v1009
    %1011 = vdwg.mxu0
    %v1012 = vadd.f32 %v681, %v1007
    %v1013 = vadd.f32 %v682, %v1010
    %v1014 = vsel %vm125, %v1012, 0.0
    %1015 = vadd.xlane.f32.xlu0 %v1014
    %v1016 = vpop.xlane.xlu0 %1015
    %v1017 = vsel %vm125, %v1013, 0.0
    %1018 = vadd.xlane.f32.xlu0 %v1017
    %v1019 = vpop.xlane.xlu0 %1018
    %v1020 = vmul.f32 %v1016, %v522
    %v1021 = vmul.f32 %v1019, %v522
    %v1022 = vsub.f32 %v1012, %v1020
    %v1023 = vsub.f32 %v1013, %v1021
    %v1024 = vmul.f32 %v1022, %v1022
    %v1025 = vmul.f32 %v1023, %v1023
    %v1026 = vsel %vm125, %v1024, 0.0
    %1027 = vadd.xlane.f32.xlu0 %v1026
    %v1028 = vpop.xlane.xlu0 %1027
    %v1029 = vsel %vm125, %v1025, 0.0
    %1030 = vadd.xlane.f32.xlu0 %v1029
    %v1031 = vpop.xlane.xlu0 %1030
    %v1032 = vmul.f32 %v1028, %v522
    %v1033 = vmul.f32 %v1031, %v522
    %v1034 = vadd.f32 %v1032, 1e-05
    %v1035 = vadd.f32 %v1033, 1e-05
    %v1036 = vrsqrt.pop %v1034
    %v1037 = vmul.f32 %v1036, %v1034
    %v1038 = vmul.f32 %v1037, %v1036
    %v1039 = vmul.f32 0.5, %v1038
    %v1040 = vsub.f32 1.5, %v1039
    %v1041 = vmul.f32 %v1036, %v1040
    %vm1042 = vweird.f32 %v1034
    %vm1043 = vweird.f32 %v1036
    %vm1044 = vmor %vm1042, %vm1043
    %v1045 = vsel %vm1044, %v1036, %v1041
    %v1046 = vrsqrt.pop %v1035
    %v1047 = vmul.f32 %v1046, %v1035
    %v1048 = vmul.f32 %v1047, %v1046
    %v1049 = vmul.f32 0.5, %v1048
    %v1050 = vsub.f32 1.5, %v1049
    %v1051 = vmul.f32 %v1046, %v1050
    %vm1052 = vweird.f32 %v1035
    %vm1053 = vweird.f32 %v1046
    %vm1054 = vmor %vm1052, %vm1053
    %v1055 = vsel %vm1054, %v1046, %v1051
    %v1056 = vmul.f32 %v1022, %v1045
    %v1057 = vmul.f32 %v1023, %v1055
    %v1058 = vperm.slane %v712, 2
    %v1059 = vmul.f32 %v1056, %v1058
    %v1060 = vmul.f32 %v1057, %v1058
    %v1061 = vperm.slane %v712, 3
    %v1062 = vadd.f32 %v1059, %v1061
    %v1063 = vadd.f32 %v1060, %v1061
    %v1065 = vperm.slane %v710, 0
    %v1068 = vsel %vm125, %v1062, 0
    %v1071 = vsel %vm125, %v1063, 0
    %1073 = vmatpush.msra.mxu0 0.0
    %1074 = vmatpush.msra.mxu0 0.0
    %1075 = vmatpush.msra.mxu0 0.0
    %1076 = vmatpush.msra.mxu0 0.0
    %1077 = vmatpush.msra.mxu0 0.0
    %1078 = vmatpush.msra.mxu0 0.0
    %1079 = vmatpush.msra.mxu0 0.0
    %1080 = vmatpush.msra.mxu0 0.0
    %1081 = vmatpush.msra.mxu0 0.0
    %1082 = vmatpush.msra.mxu0 0.0
    %1083 = vmatpush.msra.mxu0 0.0
    %1084 = vmatpush.msra.mxu0 0.0
    %1085 = vmatpush.msra.mxu0 %v699
    %1086 = vmatpush.msra.mxu0 %v698
    %1087 = vmatpush.msra.mxu0 %v697
    %1088 = vmatpush.msra.mxu0 %v696
    %1089 = vmatmul.f32.gmra.mxu0 %v1068
    %v1090 = vpop.f32.mrf.mxu0
    %v1091 = vadd.f32 %v1065, %v1090
    %1092 = vmatmul.f32.gmra.mxu0 %v1071
    %v1093 = vpop.f32.mrf.mxu0
    %v1094 = vadd.f32 %v1065, %v1093
    %1095 = vdwg.mxu0
    %v1096 = vmax.f32 %v1091, 0.0
    %v1097 = vmax.f32 %v1094, 0.0
    %v1098 = vperm.slane %v712, 1
    %v1100 = vsel %vm371, %v1096, 0
    %v1103 = vsel %vm371, %v1097, 0
    %1105 = vmatpush.msra.mxu0 0.0
    %1106 = vmatpush.msra.mxu0 0.0
    %1107 = vmatpush.msra.mxu0 0.0
    %1108 = vmatpush.msra.mxu0 0.0
    %1109 = vmatpush.msra.mxu0 0.0
    %1110 = vmatpush.msra.mxu0 0.0
    %1111 = vmatpush.msra.mxu0 0.0
    %1112 = vmatpush.msra.mxu0 0.0
    %1113 = vmatpush.msra.mxu0 %v708
    %1114 = vmatpush.msra.mxu0 %v707
    %1115 = vmatpush.msra.mxu0 %v706
    %1116 = vmatpush.msra.mxu0 %v705
    %1117 = vmatpush.msra.mxu0 %v704
    %1118 = vmatpush.msra.mxu0 %v703
    %1119 = vmatpush.msra.mxu0 %v702
    %1120 = vmatpush.msra.mxu0 %v701
    %1121 = vmatmul.f32.gmra.mxu0 %v1100
    %v1122 = vpop.f32.mrf.mxu0
    %v1123 = vadd.f32 %v1098, %v1122
    %1124 = vmatmul.f32.gmra.mxu0 %v1103
    %v1125 = vpop.f32.mrf.mxu0
    %v1126 = vadd.f32 %v1098, %v1125
    %1127 = vdwg.mxu0
    %v1128 = vadd.f32 %v1062, %v1123
    %v1129 = vadd.f32 %v1063, %v1126
    %v1130 = vsel %vm125, %v1128, 0.0
    %1131 = vadd.xlane.f32.xlu0 %v1130
    %v1132 = vpop.xlane.xlu0 %1131
    %v1133 = vsel %vm125, %v1129, 0.0
    %1134 = vadd.xlane.f32.xlu0 %v1133
    %v1135 = vpop.xlane.xlu0 %1134
    %v1136 = vmul.f32 %v1132, %v522
    %v1137 = vmul.f32 %v1135, %v522
    %v1138 = vsub.f32 %v1128, %v1136
    %v1139 = vsub.f32 %v1129, %v1137
    %v1140 = vmul.f32 %v1138, %v1138
    %v1141 = vmul.f32 %v1139, %v1139
    %v1142 = vsel %vm125, %v1140, 0.0
    %1143 = vadd.xlane.f32.xlu0 %v1142
    %v1144 = vpop.xlane.xlu0 %1143
    %v1145 = vsel %vm125, %v1141, 0.0
    %1146 = vadd.xlane.f32.xlu0 %v1145
    %v1147 = vpop.xlane.xlu0 %1146
    %v1148 = vmul.f32 %v1144, %v522
    %v1149 = vmul.f32 %v1147, %v522
    %v1150 = vadd.f32 %v1148, 1e-05
    %v1151 = vadd.f32 %v1149, 1e-05
    %v1152 = vrsqrt.pop %v1150
    %v1153 = vmul.f32 %v1152, %v1150
    %v1154 = vmul.f32 %v1153, %v1152
    %v1155 = vmul.f32 0.5, %v1154
    %v1156 = vsub.f32 1.5, %v1155
    %v1157 = vmul.f32 %v1152, %v1156
    %vm1158 = vweird.f32 %v1150
    %vm1159 = vweird.f32 %v1152
    %vm1160 = vmor %vm1158, %vm1159
    %v1161 = vsel %vm1160, %v1152, %v1157
    %v1162 = vrsqrt.pop %v1151
    %v1163 = vmul.f32 %v1162, %v1151
    %v1164 = vmul.f32 %v1163, %v1162
    %v1165 = vmul.f32 0.5, %v1164
    %v1166 = vsub.f32 1.5, %v1165
    %v1167 = vmul.f32 %v1162, %v1166
    %vm1168 = vweird.f32 %v1151
    %vm1169 = vweird.f32 %v1162
    %vm1170 = vmor %vm1168, %vm1169
    %v1171 = vsel %vm1170, %v1162, %v1167
    %v1172 = vmul.f32 %v1138, %v1161
    %v1173 = vmul.f32 %v1139, %v1171
    %v1174 = vperm.slane %v712, 4
    %v1175 = vmul.f32 %v1172, %v1174
    %v1176 = vmul.f32 %v1173, %v1174
    %v1177 = vperm.slane %v712, 5
    %v1178 = vadd.f32 %v1175, %v1177
    %v1179 = vadd.f32 %v1176, %v1177
    %1180 = vst.msk [vmem:[#allocation8] sm:$0xff] %vm125, %v1178
    %1181 = vst.msk [vmem:[#allocation8 + $0x8] sm:$0xff] %vm125, %v1179
    // Predicated region
    $region66: #{encoder_apply.1} parent=1 // pred_check
      _
    $region67: #{encoder_apply.1} parent=1 // pred_check_branch
      %1183 = sbr.rel (0) target = $region69
    $region68: #{encoder_apply.1} parent=1 // pred_region
      %1185 = vsyncadd [#allocation4], 0
      %s1186 = sshll.u32 [#allocation8], 4
      %s1187 = int_to_ptr.vmem [resolvable:$true] %s1186
      %s1188 = sshll.u32 %s13, 4
      %s1189 = int_to_ptr.hbm [resolvable:$true] %s1188
      %1194 = dma.vmem_to_hbm [thread:$0]  %s1187, 256, %s1189, [#allocation4], 128, 128, 8
    $region69: #{encoder_apply.1} parent=1 // pred_fallthru
      _
    // Predicated region
    $region70: #{encoder_apply.1} parent=1 // pred_check
      _
    $region71: #{encoder_apply.1} parent=1 // pred_check_branch
      %1196 = sbr.rel (0) target = $region73
    $region72: #{encoder_apply.1} parent=1 // pred_region
      %1198 = dma.done [#allocation4], 256
    $region73: #{encoder_apply.1} parent=1 // pred_fallthru
      _
    %1199 = vsyncpa [#allocation3], 1
    %1200 = vsyncpa [#allocation6], 1
    %1201 = vsyncpa [#allocation4], 1

</llo_original>
